<compile_context>
chip_gen: v7x
topology: tpu7x:2x2x1
jax: 0.10.0
libtpu: 0.0.40
codegen_flags: <defaults>
</compile_context>

<pallas_src>
import functools

import jax
import jax.numpy as jnp
from jax.experimental import pallas as pl
from jax.experimental.pallas import tpu as pltpu


def _round_up(x, m):
    return (x + m - 1) // m * m


def _choose_tm(B, block_b):
    """Largest multiple-of-8 divisor of B that is <= block_b, preferring a
    choice that yields >= 2 grid steps (v7x megacore). None if no divisor."""
    best_multi = None
    best_any = None
    for tm in range(8, min(B, block_b) + 1, 8):
        if B % tm == 0:
            best_any = tm
            if B // tm >= 2:
                best_multi = tm
    return best_multi if best_multi is not None else best_any


def decoder_bce_kernel(x_ref, t_ref,
                       w1_ref, b1_ref,
                       w2_ref, b2_ref,
                       w3_ref, b3_ref,
                       out_ref):
    # fc1 + ReLU  (bf16 MXU feed, f32 accumulation)
    x = x_ref[...].astype(jnp.bfloat16)
    h1 = jnp.dot(x, w1_ref[...],
                 preferred_element_type=jnp.float32) + b1_ref[...]
    h1 = jnp.maximum(h1, 0.0).astype(jnp.bfloat16)

    # fc2 + ReLU
    h2 = jnp.dot(h1, w2_ref[...],
                 preferred_element_type=jnp.float32) + b2_ref[...]
    h2 = jnp.maximum(h2, 0.0).astype(jnp.bfloat16)

    # fc3 -> pre-sigmoid logits z (sigmoid fused into the BCE below)
    z = jnp.dot(h2, w3_ref[...],
                preferred_element_type=jnp.float32) + b3_ref[...]

    # binary_cross_entropy(sigmoid(z), t, reduction='none') from logits:
    #   -log(p)   = softplus(-z),   -log(1-p) = softplus(z)
    # PyTorch clamps log at -100  <=>  clamp each softplus term at +100.
    t = t_ref[...]
    log1p_term = jnp.log1p(jnp.exp(-jnp.abs(z)))                      # stable softplus tail
    sp_pos = jnp.minimum(jnp.maximum(z, 0.0) + log1p_term, 100.0)     # -log(1-p)
    sp_neg = jnp.minimum(jnp.maximum(-z, 0.0) + log1p_term, 100.0)    # -log(p)
    out_ref[...] = t * sp_neg + (1.0 - t) * sp_pos


@functools.partial(jax.jit, static_argnames=("block_b",))
def decoder_forward(logits, target, params, *, block_b=256):
    """logits: [B, latent*cat] f32, target: [B, 784] f32 -> BCE per elem [B, 784]."""
    w1, b1, w2, b2, w3, b3 = params
    B, D_in = logits.shape
    D_out = w3.shape[1]                      # 784

    tm = _choose_tm(B, block_b)
    if tm is None:
        # Fallback only: B has no multiple-of-8 divisor -> pad the batch.
        B_pad = _round_up(B, 8)
        tm = _choose_tm(B_pad, block_b) or B_pad
        x = jnp.zeros((B_pad, D_in), logits.dtype).at[:B].set(logits)
        t = jnp.zeros((B_pad, D_out), jnp.float32).at[:B].set(
            target.astype(jnp.float32))
        padded = True
    else:
        B_pad = B
        x = logits
        t = target.astype(jnp.float32)
        padded = False

    grid = (B_pad // tm,)

    def tile_spec(shape):       # activation tiles: move with the batch grid
        return pl.BlockSpec(shape, lambda i: (i, 0))

    def resident_spec(shape):   # weights/biases: constant block -> stay in VMEM
        return pl.BlockSpec(shape, lambda i: (0, 0))

    out = pl.pallas_call(
        decoder_bce_kernel,
        out_shape=jax.ShapeDtypeStruct((B_pad, D_out), jnp.float32),
        grid=grid,
        in_specs=[
            tile_spec((tm, D_in)),
            tile_spec((tm, D_out)),
            resident_spec(w1.shape), resident_spec(b1.shape),
            resident_spec(w2.shape), resident_spec(b2.shape),
            resident_spec(w3.shape), resident_spec(b3.shape),
        ],
        out_specs=tile_spec((tm, D_out)),
        compiler_params=pltpu.CompilerParams(
            dimension_semantics=("parallel",),
        ),
    )(x, t, w1, b1, w2, b2, w3, b3)

    return out[:B] if padded else out


def init_params(key, in_dim):
    """Init mimicking nn.Linear default (uniform +/- 1/sqrt(fan_in)).
    Weights stored as [in, out] (transposed vs PyTorch) in bf16; biases f32."""
    dims = [(in_dim, 256), (256, 512), (512, 784)]
    params = []
    for fan_in, fan_out in dims:
        key, kw, kb = jax.random.split(key, 3)
        bound = 1.0 / (fan_in ** 0.5)
        w = jax.random.uniform(kw, (fan_in, fan_out), jnp.float32, -bound, bound)
        b = jax.random.uniform(kb, (1, fan_out), jnp.float32, -bound, bound)
        params += [w.astype(jnp.bfloat16), b]
    return tuple(params)


if __name__ == "__main__":
    latent_dim, categorical_dim = 8, 4
    B = 16
    in_dim = latent_dim * categorical_dim    # 32
    out_dim = 784

    key = jax.random.PRNGKey(0)
    k_params, k_logits, k_target = jax.random.split(key, 3)

    params = init_params(k_params, in_dim)
    logits = jax.random.normal(k_logits, (B, in_dim), jnp.float32)
    # target in [0, 1] like MNIST pixel intensities
    target = jax.random.uniform(k_target, (B, out_dim), jnp.float32)

    # B=16 -> TM=8, grid=(2,): exercises a multi-step batch grid with the
    # weights resident across steps and no wrapper-side pad/slice copies.
    out = decoder_forward(logits, target, params)
    jax.block_until_ready(out)

    # Pure-JAX reference with the same bf16 weight/activation casts and
    # PyTorch's sigmoid -> clamp(log, -100) BCE semantics.
    w1, b1, w2, b2, w3, b3 = params
    xb = logits.astype(jnp.bfloat16)
    h1 = jnp.maximum(jnp.dot(xb, w1, preferred_element_type=jnp.float32) + b1,
                     0.0).astype(jnp.bfloat16)
    h2 = jnp.maximum(jnp.dot(h1, w2, preferred_element_type=jnp.float32) + b2,
                     0.0).astype(jnp.bfloat16)
    z = jnp.dot(h2, w3, preferred_element_type=jnp.float32) + b3
    p = jax.nn.sigmoid(z)
    ref = -(target * jnp.maximum(jnp.log(p), -100.0)
            + (1.0 - target) * jnp.maximum(jnp.log(1.0 - p), -100.0))

    assert out.shape == (B, out_dim)
    assert jnp.allclose(out, ref, atol=1e-3, rtol=1e-3), \
        float(jnp.max(jnp.abs(out - ref)))

    print("KERNEL_OK")
</pallas_src>

<mosaic_0001>
module attributes {stable_mosaic.version = 11 : i64} {
  func.func @decoder_bce_kernel(%arg0: i32, %arg1: memref<8x32xf32, #tpu.memory_space<vmem>>, %arg2: memref<8x784xf32, #tpu.memory_space<vmem>>, %arg3: memref<32x256xbf16, #tpu.memory_space<vmem>>, %arg4: memref<1x256xf32, #tpu.memory_space<vmem>>, %arg5: memref<256x512xbf16, #tpu.memory_space<vmem>>, %arg6: memref<1x512xf32, #tpu.memory_space<vmem>>, %arg7: memref<512x784xbf16, #tpu.memory_space<vmem>>, %arg8: memref<1x784xf32, #tpu.memory_space<vmem>>, %arg9: memref<8x784xf32, #tpu.memory_space<vmem>>) attributes {dimension_semantics = [#tpu.dimension_semantics<parallel>], iteration_bounds = array<i64: 2>, scalar_prefetch = 0 : i64, scratch_operands = 0 : i64, tpu.core_type = #tpu.core_type<tc>, window_params = [{transform_indices = @transform_0, window_bounds = array<i64: 8, 32>}, {transform_indices = @transform_1, window_bounds = array<i64: 8, 784>}, {pipeline_mode = #tpu.pipeline_mode<synchronous>, transform_indices = @transform_2, window_bounds = array<i64: 32, 256>}, {pipeline_mode = #tpu.pipeline_mode<synchronous>, transform_indices = @transform_3, window_bounds = array<i64: 1, 256>}, {pipeline_mode = #tpu.pipeline_mode<synchronous>, transform_indices = @transform_4, window_bounds = array<i64: 256, 512>}, {pipeline_mode = #tpu.pipeline_mode<synchronous>, transform_indices = @transform_5, window_bounds = array<i64: 1, 512>}, {pipeline_mode = #tpu.pipeline_mode<synchronous>, transform_indices = @transform_6, window_bounds = array<i64: 512, 784>}, {pipeline_mode = #tpu.pipeline_mode<synchronous>, transform_indices = @transform_7, window_bounds = array<i64: 1, 784>}, {transform_indices = @transform_8, window_bounds = array<i64: 8, 784>}]} {
    %c0 = arith.constant 0 : index
    %c0_0 = arith.constant 0 : index
    %0 = vector.load %arg1[%c0, %c0_0] : memref<8x32xf32, #tpu.memory_space<vmem>>, vector<8x32xf32>
    %1 = arith.truncf %0 : vector<8x32xf32> to vector<8x32xbf16>
    %c0_1 = arith.constant 0 : index
    %c0_2 = arith.constant 0 : index
    %2 = vector.load %arg3[%c0_1, %c0_2] : memref<32x256xbf16, #tpu.memory_space<vmem>>, vector<32x256xbf16>
    %cst = arith.constant dense<0.000000e+00> : vector<8x256xf32>
    %3 = tpu.matmul %1, %2, %cst {dimension_numbers = #tpu.dot_dimension_numbers<[1], [0], [0], [1], [0, 0, 1, 1], [], []>} : vector<8x32xbf16>, vector<32x256xbf16>, vector<8x256xf32> -> vector<8x256xf32>
    %c0_3 = arith.constant 0 : index
    %c0_4 = arith.constant 0 : index
    %4 = vector.load %arg4[%c0_3, %c0_4] : memref<1x256xf32, #tpu.memory_space<vmem>>, vector<1x256xf32>
    %5 = vector.broadcast %4 : vector<1x256xf32> to vector<8x256xf32>
    %6 = arith.addf %3, %5 : vector<8x256xf32>
    %cst_5 = arith.constant 0.000000e+00 : f32
    %7 = vector.broadcast %cst_5 : f32 to vector<8x256xf32>
    %8 = arith.maximumf %6, %7 : vector<8x256xf32>
    %9 = arith.truncf %8 : vector<8x256xf32> to vector<8x256xbf16>
    %c0_6 = arith.constant 0 : index
    %c0_7 = arith.constant 0 : index
    %10 = vector.load %arg5[%c0_6, %c0_7] : memref<256x512xbf16, #tpu.memory_space<vmem>>, vector<256x512xbf16>
    %cst_8 = arith.constant dense<0.000000e+00> : vector<8x512xf32>
    %11 = tpu.matmul %9, %10, %cst_8 {dimension_numbers = #tpu.dot_dimension_numbers<[1], [0], [0], [1], [0, 0, 1, 1], [], []>} : vector<8x256xbf16>, vector<256x512xbf16>, vector<8x512xf32> -> vector<8x512xf32>
    %c0_9 = arith.constant 0 : index
    %c0_10 = arith.constant 0 : index
    %12 = vector.load %arg6[%c0_9, %c0_10] : memref<1x512xf32, #tpu.memory_space<vmem>>, vector<1x512xf32>
    %13 = vector.broadcast %12 : vector<1x512xf32> to vector<8x512xf32>
    %14 = arith.addf %11, %13 : vector<8x512xf32>
    %cst_11 = arith.constant 0.000000e+00 : f32
    %15 = vector.broadcast %cst_11 : f32 to vector<8x512xf32>
    %16 = arith.maximumf %14, %15 : vector<8x512xf32>
    %17 = arith.truncf %16 : vector<8x512xf32> to vector<8x512xbf16>
    %c0_12 = arith.constant 0 : index
    %c0_13 = arith.constant 0 : index
    %18 = vector.load %arg7[%c0_12, %c0_13] : memref<512x784xbf16, #tpu.memory_space<vmem>>, vector<512x784xbf16>
    %cst_14 = arith.constant dense<0.000000e+00> : vector<8x784xf32>
    %19 = tpu.matmul %17, %18, %cst_14 {dimension_numbers = #tpu.dot_dimension_numbers<[1], [0], [0], [1], [0, 0, 1, 1], [], []>} : vector<8x512xbf16>, vector<512x784xbf16>, vector<8x784xf32> -> vector<8x784xf32>
    %c0_15 = arith.constant 0 : index
    %c0_16 = arith.constant 0 : index
    %20 = vector.load %arg8[%c0_15, %c0_16] : memref<1x784xf32, #tpu.memory_space<vmem>>, vector<1x784xf32>
    %21 = vector.broadcast %20 : vector<1x784xf32> to vector<8x784xf32>
    %22 = arith.addf %19, %21 : vector<8x784xf32>
    %c0_17 = arith.constant 0 : index
    %c0_18 = arith.constant 0 : index
    %23 = vector.load %arg2[%c0_17, %c0_18] : memref<8x784xf32, #tpu.memory_space<vmem>>, vector<8x784xf32>
    %24 = math.absf %22 : vector<8x784xf32>
    %cst_19 = arith.constant 0.000000e+00 : f32
    %25 = vector.broadcast %cst_19 : f32 to vector<8x784xf32>
    %26 = arith.subf %25, %24 : vector<8x784xf32>
    %27 = math.exp %26 : vector<8x784xf32>
    %28 = math.log1p %27 : vector<8x784xf32>
    %cst_20 = arith.constant 0.000000e+00 : f32
    %29 = vector.broadcast %cst_20 : f32 to vector<8x784xf32>
    %30 = arith.maximumf %22, %29 : vector<8x784xf32>
    %31 = arith.addf %30, %28 : vector<8x784xf32>
    %cst_21 = arith.constant 1.000000e+02 : f32
    %32 = vector.broadcast %cst_21 : f32 to vector<8x784xf32>
    %33 = arith.minimumf %31, %32 : vector<8x784xf32>
    %cst_22 = arith.constant 0.000000e+00 : f32
    %34 = vector.broadcast %cst_22 : f32 to vector<8x784xf32>
    %35 = arith.subf %34, %22 : vector<8x784xf32>
    %cst_23 = arith.constant 0.000000e+00 : f32
    %36 = vector.broadcast %cst_23 : f32 to vector<8x784xf32>
    %37 = arith.maximumf %35, %36 : vector<8x784xf32>
    %38 = arith.addf %37, %28 : vector<8x784xf32>
    %cst_24 = arith.constant 1.000000e+02 : f32
    %39 = vector.broadcast %cst_24 : f32 to vector<8x784xf32>
    %40 = arith.minimumf %38, %39 : vector<8x784xf32>
    %41 = arith.mulf %23, %40 : vector<8x784xf32>
    %cst_25 = arith.constant 1.000000e+00 : f32
    %42 = vector.broadcast %cst_25 : f32 to vector<8x784xf32>
    %43 = arith.subf %42, %23 : vector<8x784xf32>
    %44 = arith.mulf %43, %33 : vector<8x784xf32>
    %45 = arith.addf %41, %44 : vector<8x784xf32>
    %c0_26 = arith.constant 0 : index
    %c0_27 = arith.constant 0 : index
    %46 = vector.load %arg9[%c0_26, %c0_27] : memref<8x784xf32, #tpu.memory_space<vmem>>, vector<8x784xf32>
    tpu.vector_store %arg9[%c0_26, %c0_27], %45 {strides = array<i32>} : memref<8x784xf32, #tpu.memory_space<vmem>>, vector<8x784xf32>,
    return
  }
  func.func @transform_0(%arg0: i32) -> (i32, i32) {
    %c0_i32 = arith.constant 0 : i32
    %c0_i32_0 = arith.constant 0 : i32
    return %arg0, %c0_i32 : i32, i32
  }
  func.func @transform_1(%arg0: i32) -> (i32, i32) {
    %c0_i32 = arith.constant 0 : i32
    %c0_i32_0 = arith.constant 0 : i32
    return %arg0, %c0_i32 : i32, i32
  }
  func.func @transform_2(%arg0: i32) -> (i32, i32) {
    %c0_i32 = arith.constant 0 : i32
    %c0_i32_0 = arith.constant 0 : i32
    %c0_i32_1 = arith.constant 0 : i32
    return %c0_i32, %c0_i32_0 : i32, i32
  }
  func.func @transform_3(%arg0: i32) -> (i32, i32) {
    %c0_i32 = arith.constant 0 : i32
    %c0_i32_0 = arith.constant 0 : i32
    %c0_i32_1 = arith.constant 0 : i32
    return %c0_i32, %c0_i32_0 : i32, i32
  }
  func.func @transform_4(%arg0: i32) -> (i32, i32) {
    %c0_i32 = arith.constant 0 : i32
    %c0_i32_0 = arith.constant 0 : i32
    %c0_i32_1 = arith.constant 0 : i32
    return %c0_i32, %c0_i32_0 : i32, i32
  }
  func.func @transform_5(%arg0: i32) -> (i32, i32) {
    %c0_i32 = arith.constant 0 : i32
    %c0_i32_0 = arith.constant 0 : i32
    %c0_i32_1 = arith.constant 0 : i32
    return %c0_i32, %c0_i32_0 : i32, i32
  }
  func.func @transform_6(%arg0: i32) -> (i32, i32) {
    %c0_i32 = arith.constant 0 : i32
    %c0_i32_0 = arith.constant 0 : i32
    %c0_i32_1 = arith.constant 0 : i32
    return %c0_i32, %c0_i32_0 : i32, i32
  }
  func.func @transform_7(%arg0: i32) -> (i32, i32) {
    %c0_i32 = arith.constant 0 : i32
    %c0_i32_0 = arith.constant 0 : i32
    %c0_i32_1 = arith.constant 0 : i32
    return %c0_i32, %c0_i32_0 : i32, i32
  }
  func.func @transform_8(%arg0: i32) -> (i32, i32) {
    %c0_i32 = arith.constant 0 : i32
    %c0_i32_0 = arith.constant 0 : i32
    return %arg0, %c0_i32 : i32, i32
  }
}

</mosaic_0001>

<llo_original>
// kernel: decoder_forward.1
$region0: #{decoder_forward.1}
  #allocation0 [shape = 'u32[]', space=smem, size = 0x4, offset = 0x4, fixed_abs, tag = 'smem constant byte address 0x4 - core index']
  #allocation1 [shape = 'u32[144,128]{1,0:T(1,128)}', space=vmem, size = 0x12000, scoped, tag = 'internal scratch']
  %s0 = inlined_call_operand.vmem [shape: f32[16,32], index: 0, kind: input, shape index: {}]
  %s1 = inlined_call_operand.vmem [shape: f32[16,784], index: 1, kind: input, shape index: {}]
  %s2 = inlined_call_operand.vmem [shape: bf16[32,256], index: 2, kind: input, shape index: {}]
  %s3 = inlined_call_operand.vmem [shape: f32[1,256], index: 3, kind: input, shape index: {}]
  %s4 = inlined_call_operand.vmem [shape: bf16[256,512], index: 4, kind: input, shape index: {}]
  %s5 = inlined_call_operand.vmem [shape: f32[1,512], index: 5, kind: input, shape index: {}]
  %s6 = inlined_call_operand.vmem [shape: bf16[512,784], index: 6, kind: input, shape index: {}]
  %s7 = inlined_call_operand.vmem [shape: f32[1,784], index: 7, kind: input, shape index: {}]
  %s8 = inlined_call_operand.hbm [shape: f32[16,784], index: 8, kind: output, shape index: {}]
  %s9 = sld [smem:[#allocation0]]
  $region65: #{decoder_forward.1} parent=0
    _
  %s11 = ssub.s32 1, %s9
  %s12 = scalar_select 0, %s11, %s9
  $region1: #{decoder_forward.1} parent=0
    #allocation2 [shape = 'u8[57344]{0}', space=vmem, size = 0xe000, scoped, tag = 'output window, operand 0']
    #allocation3 [shape = 's32[2]{0}', space=sflag, size = 0x8, scoped, tag = 'scoped memory for decoder_forward.1']
    %13 = vsyncpa [#allocation3], 0
    %s14 = scalar_lea.sflag [#allocation3], 1
    %15 = vsyncpa %s14, 0
    loop: start=0, step=1, limit=4
    $region2: #{decoder_forward.1} parent=1 // loop_pre_header
      _
    $region3: #{decoder_forward.1} parent=1 // loop_header
      %s17 = sphi 0, %s21
      %p18 = scmp.ge.s32.totalorder %s17, 4
      %s27 = sphi 0, %s29
      %s30 = sphi 0, %s27
      %s31 = sphi 0, %s30
      %s47 = sphi 0, %s31
      %s53 = sphi 0, %s55
      %s56 = sphi 0, %s53
      %s57 = sphi 0, %s56
      %s73 = sphi 0, %s57
      %s77 = sphi 0, %s77
      %s79 = sphi 0, %s77
      %s80 = sphi 0, %s79
      %s94 = sphi 0, %s80
      %s98 = sphi 0, %s98
      %s100 = sphi 0, %s98
      %s101 = sphi 0, %s100
      %s115 = sphi 0, %s101
      %s119 = sphi 0, %s119
      %s121 = sphi 0, %s119
      %s122 = sphi 0, %s121
      %s136 = sphi 0, %s122
      %s140 = sphi 0, %s140
      %s142 = sphi 0, %s140
      %s143 = sphi 0, %s142
      %s157 = sphi 0, %s143
      %s161 = sphi 0, %s161
      %s163 = sphi 0, %s161
      %s164 = sphi 0, %s163
      %s178 = sphi 0, %s164
      %s182 = sphi 0, %s182
      %s184 = sphi 0, %s182
      %s185 = sphi 0, %s184
      %s199 = sphi 0, %s185
      %s205 = sphi 0, %s207
      %s208 = sphi 0, %s205
      %s209 = sphi 0, %s208
      %s225 = sphi 0, %s209
    $region4: #{decoder_forward.1} parent=1 // loop_header_branch
      %20 = sbr.rel (%p18) target = $region8
    $region5: #{decoder_forward.1} parent=1 // loop_body
      %s22 = ssub.s32 %s17, 1
      %s23 = ssub.s32 %s17, 2
      %s24 = sadd.s32 %s17, 1
      %s25 = ssub.s32 %s17, %s24
      %p26 = scmp.eq.s32.totalorder %s25, 0
      %s28 = sadd.s32 %s27, 1
      %s29 = scalar_select %p26, %s27, %s28
      %p32 = pneg %p26
      %p33 = scmp.eq.s32.totalorder %s17, 1
      %p34 = por %p32, %p33
      %p35 = scmp.ne.s32.totalorder %s27, %s30
      %p36 = scmp.eq.s32.totalorder %s17, 0
      %p37 = por %p35, %p36
      %p38 = scmp.ne.s32.totalorder %s27, %s30
      %p39 = scmp.eq.s32.totalorder %s22, 1
      %p40 = por %p38, %p39
      %p41 = scmp.ne.s32.totalorder %s30, %s31
      %p42 = scmp.eq.s32.totalorder %s22, 0
      %p43 = por %p41, %p42
      %p44 = scmp.ne.s32.totalorder %s30, %s31
      %p45 = scmp.eq.s32.totalorder %s23, 1
      %p46 = por %p44, %p45
      %p48 = scmp.ne.s32.totalorder %s31, %s47
      %p49 = scmp.eq.s32.totalorder %s23, 0
      %p50 = por %p48, %p49
      %s51 = ssub.s32 %s17, %s24
      %p52 = scmp.eq.s32.totalorder %s51, 0
      %s54 = sadd.s32 %s53, 1
      %s55 = scalar_select %p52, %s53, %s54
      %p58 = pneg %p52
      %p59 = scmp.eq.s32.totalorder %s17, 1
      %p60 = por %p58, %p59
      %p61 = scmp.ne.s32.totalorder %s53, %s56
      %p62 = scmp.eq.s32.totalorder %s17, 0
      %p63 = por %p61, %p62
      %p64 = scmp.ne.s32.totalorder %s53, %s56
      %p65 = scmp.eq.s32.totalorder %s22, 1
      %p66 = por %p64, %p65
      %p67 = scmp.ne.s32.totalorder %s56, %s57
      %p68 = scmp.eq.s32.totalorder %s22, 0
      %p69 = por %p67, %p68
      %p70 = scmp.ne.s32.totalorder %s56, %s57
      %p71 = scmp.eq.s32.totalorder %s23, 1
      %p72 = por %p70, %p71
      %p74 = scmp.ne.s32.totalorder %s57, %s73
      %p75 = scmp.eq.s32.totalorder %s23, 0
      %p76 = por %p74, %p75
      %s78 = sadd.s32 %s77, 1
      %p81 = scmp.eq.s32.totalorder %s17, 1
      %p82 = scmp.ne.s32.totalorder %s77, %s79
      %p83 = scmp.eq.s32.totalorder %s17, 0
      %p84 = por %p82, %p83
      %p85 = scmp.ne.s32.totalorder %s77, %s79
      %p86 = scmp.eq.s32.totalorder %s22, 1
      %p87 = por %p85, %p86
      %p88 = scmp.ne.s32.totalorder %s79, %s80
      %p89 = scmp.eq.s32.totalorder %s22, 0
      %p90 = por %p88, %p89
      %p91 = scmp.ne.s32.totalorder %s79, %s80
      %p92 = scmp.eq.s32.totalorder %s23, 1
      %p93 = por %p91, %p92
      %p95 = scmp.ne.s32.totalorder %s80, %s94
      %p96 = scmp.eq.s32.totalorder %s23, 0
      %p97 = por %p95, %p96
      %s99 = sadd.s32 %s98, 1
      %p102 = scmp.eq.s32.totalorder %s17, 1
      %p103 = scmp.ne.s32.totalorder %s98, %s100
      %p104 = scmp.eq.s32.totalorder %s17, 0
      %p105 = por %p103, %p104
      %p106 = scmp.ne.s32.totalorder %s98, %s100
      %p107 = scmp.eq.s32.totalorder %s22, 1
      %p108 = por %p106, %p107
      %p109 = scmp.ne.s32.totalorder %s100, %s101
      %p110 = scmp.eq.s32.totalorder %s22, 0
      %p111 = por %p109, %p110
      %p112 = scmp.ne.s32.totalorder %s100, %s101
      %p113 = scmp.eq.s32.totalorder %s23, 1
      %p114 = por %p112, %p113
      %p116 = scmp.ne.s32.totalorder %s101, %s115
      %p117 = scmp.eq.s32.totalorder %s23, 0
      %p118 = por %p116, %p117
      %s120 = sadd.s32 %s119, 1
      %p123 = scmp.eq.s32.totalorder %s17, 1
      %p124 = scmp.ne.s32.totalorder %s119, %s121
      %p125 = scmp.eq.s32.totalorder %s17, 0
      %p126 = por %p124, %p125
      %p127 = scmp.ne.s32.totalorder %s119, %s121
      %p128 = scmp.eq.s32.totalorder %s22, 1
      %p129 = por %p127, %p128
      %p130 = scmp.ne.s32.totalorder %s121, %s122
      %p131 = scmp.eq.s32.totalorder %s22, 0
      %p132 = por %p130, %p131
      %p133 = scmp.ne.s32.totalorder %s121, %s122
      %p134 = scmp.eq.s32.totalorder %s23, 1
      %p135 = por %p133, %p134
      %p137 = scmp.ne.s32.totalorder %s122, %s136
      %p138 = scmp.eq.s32.totalorder %s23, 0
      %p139 = por %p137, %p138
      %s141 = sadd.s32 %s140, 1
      %p144 = scmp.eq.s32.totalorder %s17, 1
      %p145 = scmp.ne.s32.totalorder %s140, %s142
      %p146 = scmp.eq.s32.totalorder %s17, 0
      %p147 = por %p145, %p146
      %p148 = scmp.ne.s32.totalorder %s140, %s142
      %p149 = scmp.eq.s32.totalorder %s22, 1
      %p150 = por %p148, %p149
      %p151 = scmp.ne.s32.totalorder %s142, %s143
      %p152 = scmp.eq.s32.totalorder %s22, 0
      %p153 = por %p151, %p152
      %p154 = scmp.ne.s32.totalorder %s142, %s143
      %p155 = scmp.eq.s32.totalorder %s23, 1
      %p156 = por %p154, %p155
      %p158 = scmp.ne.s32.totalorder %s143, %s157
      %p159 = scmp.eq.s32.totalorder %s23, 0
      %p160 = por %p158, %p159
      %s162 = sadd.s32 %s161, 1
      %p165 = scmp.eq.s32.totalorder %s17, 1
      %p166 = scmp.ne.s32.totalorder %s161, %s163
      %p167 = scmp.eq.s32.totalorder %s17, 0
      %p168 = por %p166, %p167
      %p169 = scmp.ne.s32.totalorder %s161, %s163
      %p170 = scmp.eq.s32.totalorder %s22, 1
      %p171 = por %p169, %p170
      %p172 = scmp.ne.s32.totalorder %s163, %s164
      %p173 = scmp.eq.s32.totalorder %s22, 0
      %p174 = por %p172, %p173
      %p175 = scmp.ne.s32.totalorder %s163, %s164
      %p176 = scmp.eq.s32.totalorder %s23, 1
      %p177 = por %p175, %p176
      %p179 = scmp.ne.s32.totalorder %s164, %s178
      %p180 = scmp.eq.s32.totalorder %s23, 0
      %p181 = por %p179, %p180
      %s183 = sadd.s32 %s182, 1
      %p186 = scmp.eq.s32.totalorder %s17, 1
      %p187 = scmp.ne.s32.totalorder %s182, %s184
      %p188 = scmp.eq.s32.totalorder %s17, 0
      %p189 = por %p187, %p188
      %p190 = scmp.ne.s32.totalorder %s182, %s184
      %p191 = scmp.eq.s32.totalorder %s22, 1
      %p192 = por %p190, %p191
      %p193 = scmp.ne.s32.totalorder %s184, %s185
      %p194 = scmp.eq.s32.totalorder %s22, 0
      %p195 = por %p193, %p194
      %p196 = scmp.ne.s32.totalorder %s184, %s185
      %p197 = scmp.eq.s32.totalorder %s23, 1
      %p198 = por %p196, %p197
      %p200 = scmp.ne.s32.totalorder %s185, %s199
      %p201 = scmp.eq.s32.totalorder %s23, 0
      %p202 = por %p200, %p201
      %s203 = ssub.s32 %s17, %s24
      %p204 = scmp.eq.s32.totalorder %s203, 0
      %s206 = sadd.s32 %s205, 1
      %s207 = scalar_select %p204, %s205, %s206
      %p210 = pneg %p204
      %p211 = scmp.eq.s32.totalorder %s17, 1
      %p212 = por %p210, %p211
      %p213 = scmp.ne.s32.totalorder %s205, %s208
      %p214 = scmp.eq.s32.totalorder %s17, 0
      %p215 = por %p213, %p214
      %p216 = scmp.ne.s32.totalorder %s205, %s208
      %p217 = scmp.eq.s32.totalorder %s22, 1
      %p218 = por %p216, %p217
      %p219 = scmp.ne.s32.totalorder %s208, %s209
      %p220 = scmp.eq.s32.totalorder %s22, 0
      %p221 = por %p219, %p220
      %p222 = scmp.ne.s32.totalorder %s208, %s209
      %p223 = scmp.eq.s32.totalorder %s23, 1
      %p224 = por %p222, %p223
      %p226 = scmp.ne.s32.totalorder %s209, %s225
      %p227 = scmp.eq.s32.totalorder %s23, 0
      %p228 = por %p226, %p227
      %p229 = scmp.le.s32.totalorder 1, %s17
      %p230 = scmp.lt.s32.totalorder %s17, 3
      %p231 = pnand %p229, %p230
      %p232 = pneg %p231
      // Predicated region
      $region9: #{decoder_forward.1} parent=5 // pred_check
        _
      $region10: #{decoder_forward.1} parent=5 // pred_check_branch
        %234 = sbr.rel (%p231) target = $region12
      $region11: #{decoder_forward.1} parent=5 // pred_region
        %s235 = ssub.s32 %s17, 1
        // Predicated region
        $region13: #{decoder_forward.1} parent=11 // pred_check
          %p236 = pneg %p90
        $region14: #{decoder_forward.1} parent=11 // pred_check_branch
          %238 = sbr.rel (%p236) target = $region16
        $region15: #{decoder_forward.1} parent=11 // pred_region
          _
        $region16: #{decoder_forward.1} parent=11 // pred_fallthru
          _
        // Predicated region
        $region17: #{decoder_forward.1} parent=11 // pred_check
          %p239 = pneg %p111
        $region18: #{decoder_forward.1} parent=11 // pred_check_branch
          %241 = sbr.rel (%p239) target = $region20
        $region19: #{decoder_forward.1} parent=11 // pred_region
          _
        $region20: #{decoder_forward.1} parent=11 // pred_fallthru
          _
        // Predicated region
        $region21: #{decoder_forward.1} parent=11 // pred_check
          %p242 = pneg %p132
        $region22: #{decoder_forward.1} parent=11 // pred_check_branch
          %244 = sbr.rel (%p242) target = $region24
        $region23: #{decoder_forward.1} parent=11 // pred_region
          _
        $region24: #{decoder_forward.1} parent=11 // pred_fallthru
          _
        // Predicated region
        $region25: #{decoder_forward.1} parent=11 // pred_check
          %p245 = pneg %p153
        $region26: #{decoder_forward.1} parent=11 // pred_check_branch
          %247 = sbr.rel (%p245) target = $region28
        $region27: #{decoder_forward.1} parent=11 // pred_region
          _
        $region28: #{decoder_forward.1} parent=11 // pred_fallthru
          _
        // Predicated region
        $region29: #{decoder_forward.1} parent=11 // pred_check
          %p248 = pneg %p174
        $region30: #{decoder_forward.1} parent=11 // pred_check_branch
          %250 = sbr.rel (%p248) target = $region32
        $region31: #{decoder_forward.1} parent=11 // pred_region
          _
        $region32: #{decoder_forward.1} parent=11 // pred_fallthru
          _
        // Predicated region
        $region33: #{decoder_forward.1} parent=11 // pred_check
          %p251 = pneg %p195
        $region34: #{decoder_forward.1} parent=11 // pred_check_branch
          %253 = sbr.rel (%p251) target = $region36
        $region35: #{decoder_forward.1} parent=11 // pred_region
          _
        $region36: #{decoder_forward.1} parent=11 // pred_fallthru
          _
      $region12: #{decoder_forward.1} parent=5 // pred_fallthru
        _
      %p254 = scmp.lt.s32.totalorder %s17, 2
      // Predicated region
      $region37: #{decoder_forward.1} parent=5 // pred_check
        %p255 = pneg %p254
      $region38: #{decoder_forward.1} parent=5 // pred_check_branch
        %257 = sbr.rel (%p255) target = $region40
      $region39: #{decoder_forward.1} parent=5 // pred_region
        // Predicated region
        $region41: #{decoder_forward.1} parent=39 // pred_check
          %p258 = pneg %p37
        $region42: #{decoder_forward.1} parent=39 // pred_check_branch
          %260 = sbr.rel (%p258) target = $region44
        $region43: #{decoder_forward.1} parent=39 // pred_region
          %p261 = scmp.lt.s32.totalorder %s17, 1
          %s262 = scalar_select %p261, %s17, 1
          %s263 = smul.addr %s262, 8
          %s264 = scalar_lea.vmem %s0, %s263
        $region44: #{decoder_forward.1} parent=39 // pred_fallthru
          _
        // Predicated region
        $region45: #{decoder_forward.1} parent=39 // pred_check
          %p265 = pneg %p63
        $region46: #{decoder_forward.1} parent=39 // pred_check_branch
          %267 = sbr.rel (%p265) target = $region48
        $region47: #{decoder_forward.1} parent=39 // pred_region
          %p268 = scmp.lt.s32.totalorder %s17, 1
          %s269 = scalar_select %p268, %s17, 1
          %s270 = smul.addr %s269, 7
          %s271 = smul.addr %s270, 8
          %s272 = scalar_lea.vmem %s1, %s271
        $region48: #{decoder_forward.1} parent=39 // pred_fallthru
          _
      $region40: #{decoder_forward.1} parent=5 // pred_fallthru
        _
      %p273 = scmp.le.s32.totalorder 1, %s17
      %p274 = scmp.lt.s32.totalorder %s17, 3
      %p275 = pnand %p273, %p274
      %p276 = pneg %p275
      // Predicated region
      $region49: #{decoder_forward.1} parent=5 // pred_check
        _
      $region50: #{decoder_forward.1} parent=5 // pred_check_branch
        %278 = sbr.rel (%p275) target = $region52
      $region51: #{decoder_forward.1} parent=5 // pred_region
        %s279 = ssub.s32 %s17, 1
        %p280 = scmp.lt.s32.totalorder %s22, 1
        %s281 = scalar_select %p280, %s22, 1
        %s282 = smul.addr %s281, 8
        %s283 = scalar_lea.vmem %s0, %s282
        %p284 = pneg %p43
        %p285 = pneg %p40
        %p286 = scmp.lt.s32.totalorder %s22, 1
        %s287 = scalar_select %p286, %s22, 1
        %s288 = smul.addr %s287, 7
        %s289 = smul.addr %s288, 8
        %s290 = scalar_lea.vmem %s1, %s289
        %p291 = pneg %p69
        %p292 = pneg %p66
        %p293 = pneg %p90
        %p294 = pneg %p87
        %p295 = pneg %p111
        %p296 = pneg %p108
        %p297 = pneg %p132
        %p298 = pneg %p129
        %p299 = pneg %p153
        %p300 = pneg %p150
        %p301 = pneg %p174
        %p302 = pneg %p171
        %p303 = pneg %p195
        %p304 = pneg %p192
        %p305 = pneg %p221
        %p306 = pneg %p218
        %s307 = sand.u32 %s208, 1
        %s308 = scalar_lea.sflag [#allocation3], %s307
        %s309 = sand.u32 %s208, 1
        %s310 = smul.addr %s309, 56
        %s311 = scalar_lea.vmem [#allocation2], %s310
        %p312 = scmp.lt.s32.totalorder %s22, 1
        %s313 = scalar_select %p312, %s22, 1
        %s314 = smul.addr %s313, 8
        %s315 = scalar_lea.vmem %s0, %s314
        %p316 = scmp.lt.s32.totalorder %s22, 1
        %s317 = scalar_select %p316, %s22, 1
        %s318 = smul.addr %s317, 7
        %s319 = smul.addr %s318, 8
        %s320 = scalar_lea.vmem %s1, %s319
        %v322 = vld [vmem:[%s315] sm:$0xff]
        %v323 = vpack.c.bf16 %v322, %v322
        %v324 = vld [vmem:[%s2] sm:$0xff]
        %v325 = vld [vmem:[%s2 + $0x8] sm:$0xff]
        %v326 = vld [vmem:[%s2 + $0x10] sm:$0xff]
        %v327 = vld [vmem:[%s2 + $0x18] sm:$0xff]
        %v328 = vld [vmem:[%s3] sm:$0x3]
        %v330 = vlaneseq
        %v331 = vshrl.u32 %v330, 7
        %v332 = vsub.s32 0, %v331
        %v333 = vrot.slane %v328, %v332
        %v334 = vlaneseq
        %v335 = vshrl.u32 %v334, 7
        %v336 = vsub.s32 1, %v335
        %v337 = vrot.slane %v328, %v336
        %v344 = vunpack.c.l.b16 %v324
        %v345 = vunpack.c.h.b16 %v324
        %v346 = vunpack.c.l.b16 %v325
        %v347 = vunpack.c.h.b16 %v325
        %v348 = vunpack.c.l.b16 %v326
        %v349 = vunpack.c.h.b16 %v326
        %v350 = vunpack.c.l.b16 %v327
        %v351 = vunpack.c.h.b16 %v327
        %v352 = vpack.c.b16 %v346, %v344
        %v353 = vpack.c.b16 %v347, %v345
        %v354 = vpack.c.b16 %v350, %v348
        %v355 = vpack.c.b16 %v351, %v349
        %vm360 = vcmask 261120
        %v362 = vsel %vm360, %v323, 0
        %364 = vmatprep.subr.bf16.mxu0 %v353
        %365 = vmatpush1.bf16.msra.mxu0 %v352
        %366 = vmatprep.subr.bf16.mxu0 %v355
        %367 = vmatpush1.bf16.msra.mxu0 %v354
        %368 = vmatprep.subr.bf16.mxu0 0
        %369 = vmatpush1.bf16.msra.mxu0 0
        %370 = vmatprep.subr.bf16.mxu0 0
        %371 = vmatpush1.bf16.msra.mxu0 0
        %372 = vmatprep.subr.bf16.mxu0 0
        %373 = vmatpush1.bf16.msra.mxu0 0
        %374 = vmatprep.subr.bf16.mxu0 0
        %375 = vmatpush1.bf16.msra.mxu0 0
        %376 = vmatprep.subr.bf16.mxu0 0
        %377 = vmatpush1.bf16.msra.mxu0 0
        %378 = vmatprep.subr.bf16.mxu0 0
        %379 = vmatpush1.bf16.msra.mxu0 0
        %380 = vmatprep.subr.bf16.mxu0 0
        %381 = vmatpush1.bf16.msra.mxu0 0
        %382 = vmatprep.subr.bf16.mxu0 0
        %383 = vmatpush1.bf16.msra.mxu0 0
        %384 = vmatprep.subr.bf16.mxu0 0
        %385 = vmatpush1.bf16.msra.mxu0 0
        %386 = vmatprep.subr.bf16.mxu0 0
        %387 = vmatpush1.bf16.msra.mxu0 0
        %388 = vmatprep.subr.bf16.mxu0 0
        %389 = vmatpush1.bf16.msra.mxu0 0
        %390 = vmatprep.subr.bf16.mxu0 0
        %391 = vmatpush1.bf16.msra.mxu0 0
        %392 = vmatprep.subr.bf16.mxu0 0
        %393 = vmatpush1.bf16.msra.mxu0 0
        %394 = vmatprep.subr.bf16.mxu0 0
        %395 = vmatpush1.bf16.msra.mxu0 0
        %396 = vmatprep.mubr.bf16.mxu0 0
        %397 = vmatmul.mubr.bf16.gmra.mrb[0].mxu0 %v362
        %v398 = vpop.f32.mrb[0].mxu0
        %v399 = vadd.f32 %v333, %v398
        %v400 = vpop.f32.mrb[0].mxu0
        %v401 = vadd.f32 %v337, %v400
        %v402 = vpop.f32.mrb[0].mxu0
        %v403 = vpop.f32.mrb[0].mxu0
        %404 = vdwg.mxu0
        %v405 = vmax.f32 %v399, 0.0
        %v406 = vmax.f32 %v401, 0.0
        %v407 = vpack.c.bf16 %v405, %v405
        %v408 = vpack.c.bf16 %v406, %v406
        %v409 = vld [vmem:[%s4] sm:$0xff]
        %v410 = vld [vmem:[%s4 + $0x8] sm:$0xff]
        %v411 = vld [vmem:[%s4 + $0x10] sm:$0xff]
        %v412 = vld [vmem:[%s4 + $0x18] sm:$0xff]
        %v413 = vld [vmem:[%s4 + $0x20] sm:$0xff]
        %v414 = vld [vmem:[%s4 + $0x28] sm:$0xff]
        %v415 = vld [vmem:[%s4 + $0x30] sm:$0xff]
        %v416 = vld [vmem:[%s4 + $0x38] sm:$0xff]
        %v417 = vld [vmem:[%s4 + $0x40] sm:$0xff]
        %v418 = vld [vmem:[%s4 + $0x48] sm:$0xff]
        %v419 = vld [vmem:[%s4 + $0x50] sm:$0xff]
        %v420 = vld [vmem:[%s4 + $0x58] sm:$0xff]
        %v421 = vld [vmem:[%s4 + $0x60] sm:$0xff]
        %v422 = vld [vmem:[%s4 + $0x68] sm:$0xff]
        %v423 = vld [vmem:[%s4 + $0x70] sm:$0xff]
        %v424 = vld [vmem:[%s4 + $0x78] sm:$0xff]
        %v425 = vld [vmem:[%s4 + $0x80] sm:$0xff]
        %v426 = vld [vmem:[%s4 + $0x88] sm:$0xff]
        %v427 = vld [vmem:[%s4 + $0x90] sm:$0xff]
        %v428 = vld [vmem:[%s4 + $0x98] sm:$0xff]
        %v429 = vld [vmem:[%s4 + $0xa0] sm:$0xff]
        %v430 = vld [vmem:[%s4 + $0xa8] sm:$0xff]
        %v431 = vld [vmem:[%s4 + $0xb0] sm:$0xff]
        %v432 = vld [vmem:[%s4 + $0xb8] sm:$0xff]
        %v433 = vld [vmem:[%s4 + $0xc0] sm:$0xff]
        %v434 = vld [vmem:[%s4 + $0xc8] sm:$0xff]
        %v435 = vld [vmem:[%s4 + $0xd0] sm:$0xff]
        %v436 = vld [vmem:[%s4 + $0xd8] sm:$0xff]
        %v437 = vld [vmem:[%s4 + $0xe0] sm:$0xff]
        %v438 = vld [vmem:[%s4 + $0xe8] sm:$0xff]
        %v439 = vld [vmem:[%s4 + $0xf0] sm:$0xff]
        %v440 = vld [vmem:[%s4 + $0xf8] sm:$0xff]
        %v441 = vld [vmem:[%s4 + $0x100] sm:$0xff]
        %v442 = vld [vmem:[%s4 + $0x108] sm:$0xff]
        %v443 = vld [vmem:[%s4 + $0x110] sm:$0xff]
        %v444 = vld [vmem:[%s4 + $0x118] sm:$0xff]
        %v445 = vld [vmem:[%s4 + $0x120] sm:$0xff]
        %v446 = vld [vmem:[%s4 + $0x128] sm:$0xff]
        %v447 = vld [vmem:[%s4 + $0x130] sm:$0xff]
        %v448 = vld [vmem:[%s4 + $0x138] sm:$0xff]
        %v449 = vld [vmem:[%s4 + $0x140] sm:$0xff]
        %v450 = vld [vmem:[%s4 + $0x148] sm:$0xff]
        %v451 = vld [vmem:[%s4 + $0x150] sm:$0xff]
        %v452 = vld [vmem:[%s4 + $0x158] sm:$0xff]
        %v453 = vld [vmem:[%s4 + $0x160] sm:$0xff]
        %v454 = vld [vmem:[%s4 + $0x168] sm:$0xff]
        %v455 = vld [vmem:[%s4 + $0x170] sm:$0xff]
        %v456 = vld [vmem:[%s4 + $0x178] sm:$0xff]
        %v457 = vld [vmem:[%s4 + $0x180] sm:$0xff]
        %v458 = vld [vmem:[%s4 + $0x188] sm:$0xff]
        %v459 = vld [vmem:[%s4 + $0x190] sm:$0xff]
        %v460 = vld [vmem:[%s4 + $0x198] sm:$0xff]
        %v461 = vld [vmem:[%s4 + $0x1a0] sm:$0xff]
        %v462 = vld [vmem:[%s4 + $0x1a8] sm:$0xff]
        %v463 = vld [vmem:[%s4 + $0x1b0] sm:$0xff]
        %v464 = vld [vmem:[%s4 + $0x1b8] sm:$0xff]
        %v465 = vld [vmem:[%s4 + $0x1c0] sm:$0xff]
        %v466 = vld [vmem:[%s4 + $0x1c8] sm:$0xff]
        %v467 = vld [vmem:[%s4 + $0x1d0] sm:$0xff]
        %v468 = vld [vmem:[%s4 + $0x1d8] sm:$0xff]
        %v469 = vld [vmem:[%s4 + $0x1e0] sm:$0xff]
        %v470 = vld [vmem:[%s4 + $0x1e8] sm:$0xff]
        %v471 = vld [vmem:[%s4 + $0x1f0] sm:$0xff]
        %v472 = vld [vmem:[%s4 + $0x1f8] sm:$0xff]
        %v473 = vld [vmem:[%s5] sm:$0xf]
        %v475 = vlaneseq
        %v476 = vshrl.u32 %v475, 7
        %v477 = vsub.s32 0, %v476
        %v478 = vrot.slane %v473, %v477
        %v479 = vlaneseq
        %v480 = vshrl.u32 %v479, 7
        %v481 = vsub.s32 1, %v480
        %v482 = vrot.slane %v473, %v481
        %v483 = vlaneseq
        %v484 = vshrl.u32 %v483, 7
        %v485 = vsub.s32 2, %v484
        %v486 = vrot.slane %v473, %v485
        %v487 = vlaneseq
        %v488 = vshrl.u32 %v487, 7
        %v489 = vsub.s32 3, %v488
        %v490 = vrot.slane %v473, %v489
        %v559 = vunpack.c.l.b16 %v409
        %v560 = vunpack.c.h.b16 %v409
        %v561 = vunpack.c.l.b16 %v410
        %v562 = vunpack.c.h.b16 %v410
        %v563 = vunpack.c.l.b16 %v411
        %v564 = vunpack.c.h.b16 %v411
        %v565 = vunpack.c.l.b16 %v412
        %v566 = vunpack.c.h.b16 %v412
        %v567 = vunpack.c.l.b16 %v413
        %v568 = vunpack.c.h.b16 %v413
        %v569 = vunpack.c.l.b16 %v414
        %v570 = vunpack.c.h.b16 %v414
        %v571 = vunpack.c.l.b16 %v415
        %v572 = vunpack.c.h.b16 %v415
        %v573 = vunpack.c.l.b16 %v416
        %v574 = vunpack.c.h.b16 %v416
        %v575 = vunpack.c.l.b16 %v417
        %v576 = vunpack.c.h.b16 %v417
        %v577 = vunpack.c.l.b16 %v418
        %v578 = vunpack.c.h.b16 %v418
        %v579 = vunpack.c.l.b16 %v419
        %v580 = vunpack.c.h.b16 %v419
        %v581 = vunpack.c.l.b16 %v420
        %v582 = vunpack.c.h.b16 %v420
        %v583 = vunpack.c.l.b16 %v421
        %v584 = vunpack.c.h.b16 %v421
        %v585 = vunpack.c.l.b16 %v422
        %v586 = vunpack.c.h.b16 %v422
        %v587 = vunpack.c.l.b16 %v423
        %v588 = vunpack.c.h.b16 %v423
        %v589 = vunpack.c.l.b16 %v424
        %v590 = vunpack.c.h.b16 %v424
        %v591 = vunpack.c.l.b16 %v425
        %v592 = vunpack.c.h.b16 %v425
        %v593 = vunpack.c.l.b16 %v426
        %v594 = vunpack.c.h.b16 %v426
        %v595 = vunpack.c.l.b16 %v427
        %v596 = vunpack.c.h.b16 %v427
        %v597 = vunpack.c.l.b16 %v428
        %v598 = vunpack.c.h.b16 %v428
        %v599 = vunpack.c.l.b16 %v429
        %v600 = vunpack.c.h.b16 %v429
        %v601 = vunpack.c.l.b16 %v430
        %v602 = vunpack.c.h.b16 %v430
        %v603 = vunpack.c.l.b16 %v431
        %v604 = vunpack.c.h.b16 %v431
        %v605 = vunpack.c.l.b16 %v432
        %v606 = vunpack.c.h.b16 %v432
        %v607 = vunpack.c.l.b16 %v433
        %v608 = vunpack.c.h.b16 %v433
        %v609 = vunpack.c.l.b16 %v434
        %v610 = vunpack.c.h.b16 %v434
        %v611 = vunpack.c.l.b16 %v435
        %v612 = vunpack.c.h.b16 %v435
        %v613 = vunpack.c.l.b16 %v436
        %v614 = vunpack.c.h.b16 %v436
        %v615 = vunpack.c.l.b16 %v437
        %v616 = vunpack.c.h.b16 %v437
        %v617 = vunpack.c.l.b16 %v438
        %v618 = vunpack.c.h.b16 %v438
        %v619 = vunpack.c.l.b16 %v439
        %v620 = vunpack.c.h.b16 %v439
        %v621 = vunpack.c.l.b16 %v440
        %v622 = vunpack.c.h.b16 %v440
        %v623 = vunpack.c.l.b16 %v441
        %v624 = vunpack.c.h.b16 %v441
        %v625 = vunpack.c.l.b16 %v442
        %v626 = vunpack.c.h.b16 %v442
        %v627 = vunpack.c.l.b16 %v443
        %v628 = vunpack.c.h.b16 %v443
        %v629 = vunpack.c.l.b16 %v444
        %v630 = vunpack.c.h.b16 %v444
        %v631 = vunpack.c.l.b16 %v445
        %v632 = vunpack.c.h.b16 %v445
        %v633 = vunpack.c.l.b16 %v446
        %v634 = vunpack.c.h.b16 %v446
        %v635 = vunpack.c.l.b16 %v447
        %v636 = vunpack.c.h.b16 %v447
        %v637 = vunpack.c.l.b16 %v448
        %v638 = vunpack.c.h.b16 %v448
        %v639 = vunpack.c.l.b16 %v449
        %v640 = vunpack.c.h.b16 %v449
        %v641 = vunpack.c.l.b16 %v450
        %v642 = vunpack.c.h.b16 %v450
        %v643 = vunpack.c.l.b16 %v451
        %v644 = vunpack.c.h.b16 %v451
        %v645 = vunpack.c.l.b16 %v452
        %v646 = vunpack.c.h.b16 %v452
        %v647 = vunpack.c.l.b16 %v453
        %v648 = vunpack.c.h.b16 %v453
        %v649 = vunpack.c.l.b16 %v454
        %v650 = vunpack.c.h.b16 %v454
        %v651 = vunpack.c.l.b16 %v455
        %v652 = vunpack.c.h.b16 %v455
        %v653 = vunpack.c.l.b16 %v456
        %v654 = vunpack.c.h.b16 %v456
        %v655 = vunpack.c.l.b16 %v457
        %v656 = vunpack.c.h.b16 %v457
        %v657 = vunpack.c.l.b16 %v458
        %v658 = vunpack.c.h.b16 %v458
        %v659 = vunpack.c.l.b16 %v459
        %v660 = vunpack.c.h.b16 %v459
        %v661 = vunpack.c.l.b16 %v460
        %v662 = vunpack.c.h.b16 %v460
        %v663 = vunpack.c.l.b16 %v461
        %v664 = vunpack.c.h.b16 %v461
        %v665 = vunpack.c.l.b16 %v462
        %v666 = vunpack.c.h.b16 %v462
        %v667 = vunpack.c.l.b16 %v463
        %v668 = vunpack.c.h.b16 %v463
        %v669 = vunpack.c.l.b16 %v464
        %v670 = vunpack.c.h.b16 %v464
        %v671 = vunpack.c.l.b16 %v465
        %v672 = vunpack.c.h.b16 %v465
        %v673 = vunpack.c.l.b16 %v466
        %v674 = vunpack.c.h.b16 %v466
        %v675 = vunpack.c.l.b16 %v467
        %v676 = vunpack.c.h.b16 %v467
        %v677 = vunpack.c.l.b16 %v468
        %v678 = vunpack.c.h.b16 %v468
        %v679 = vunpack.c.l.b16 %v469
        %v680 = vunpack.c.h.b16 %v469
        %v681 = vunpack.c.l.b16 %v470
        %v682 = vunpack.c.h.b16 %v470
        %v683 = vunpack.c.l.b16 %v471
        %v684 = vunpack.c.h.b16 %v471
        %v685 = vunpack.c.l.b16 %v472
        %v686 = vunpack.c.h.b16 %v472
        %v687 = vpack.c.b16 %v563, %v559
        %v688 = vpack.c.b16 %v564, %v560
        %v689 = vpack.c.b16 %v565, %v561
        %v690 = vpack.c.b16 %v566, %v562
        %v691 = vpack.c.b16 %v571, %v567
        %v692 = vpack.c.b16 %v572, %v568
        %v693 = vpack.c.b16 %v573, %v569
        %v694 = vpack.c.b16 %v574, %v570
        %v695 = vpack.c.b16 %v579, %v575
        %v696 = vpack.c.b16 %v580, %v576
        %v697 = vpack.c.b16 %v581, %v577
        %v698 = vpack.c.b16 %v582, %v578
        %v699 = vpack.c.b16 %v587, %v583
        %v700 = vpack.c.b16 %v588, %v584
        %v701 = vpack.c.b16 %v589, %v585
        %v702 = vpack.c.b16 %v590, %v586
        %v703 = vpack.c.b16 %v595, %v591
        %v704 = vpack.c.b16 %v596, %v592
        %v705 = vpack.c.b16 %v597, %v593
        %v706 = vpack.c.b16 %v598, %v594
        %v707 = vpack.c.b16 %v603, %v599
        %v708 = vpack.c.b16 %v604, %v600
        %v709 = vpack.c.b16 %v605, %v601
        %v710 = vpack.c.b16 %v606, %v602
        %v711 = vpack.c.b16 %v611, %v607
        %v712 = vpack.c.b16 %v612, %v608
        %v713 = vpack.c.b16 %v613, %v609
        %v714 = vpack.c.b16 %v614, %v610
        %v715 = vpack.c.b16 %v619, %v615
        %v716 = vpack.c.b16 %v620, %v616
        %v717 = vpack.c.b16 %v621, %v617
        %v718 = vpack.c.b16 %v622, %v618
        %v719 = vpack.c.b16 %v627, %v623
        %v720 = vpack.c.b16 %v628, %v624
        %v721 = vpack.c.b16 %v629, %v625
        %v722 = vpack.c.b16 %v630, %v626
        %v723 = vpack.c.b16 %v635, %v631
        %v724 = vpack.c.b16 %v636, %v632
        %v725 = vpack.c.b16 %v637, %v633
        %v726 = vpack.c.b16 %v638, %v634
        %v727 = vpack.c.b16 %v643, %v639
        %v728 = vpack.c.b16 %v644, %v640
        %v729 = vpack.c.b16 %v645, %v641
        %v730 = vpack.c.b16 %v646, %v642
        %v731 = vpack.c.b16 %v651, %v647
        %v732 = vpack.c.b16 %v652, %v648
        %v733 = vpack.c.b16 %v653, %v649
        %v734 = vpack.c.b16 %v654, %v650
        %v735 = vpack.c.b16 %v659, %v655
        %v736 = vpack.c.b16 %v660, %v656
        %v737 = vpack.c.b16 %v661, %v657
        %v738 = vpack.c.b16 %v662, %v658
        %v739 = vpack.c.b16 %v667, %v663
        %v740 = vpack.c.b16 %v668, %v664
        %v741 = vpack.c.b16 %v669, %v665
        %v742 = vpack.c.b16 %v670, %v666
        %v743 = vpack.c.b16 %v675, %v671
        %v744 = vpack.c.b16 %v676, %v672
        %v745 = vpack.c.b16 %v677, %v673
        %v746 = vpack.c.b16 %v678, %v674
        %v747 = vpack.c.b16 %v683, %v679
        %v748 = vpack.c.b16 %v684, %v680
        %v749 = vpack.c.b16 %v685, %v681
        %v750 = vpack.c.b16 %v686, %v682
        %815 = vmatprep.subr.bf16.mxu0 %v688
        %816 = vmatpush1.bf16.msra.mxu0 %v687
        %817 = vmatprep.subr.bf16.mxu0 %v692
        %818 = vmatpush1.bf16.msra.mxu0 %v691
        %819 = vmatprep.subr.bf16.mxu0 %v696
        %820 = vmatpush1.bf16.msra.mxu0 %v695
        %821 = vmatprep.subr.bf16.mxu0 %v700
        %822 = vmatpush1.bf16.msra.mxu0 %v699
        %823 = vmatprep.subr.bf16.mxu0 %v704
        %824 = vmatpush1.bf16.msra.mxu0 %v703
        %825 = vmatprep.subr.bf16.mxu0 %v708
        %826 = vmatpush1.bf16.msra.mxu0 %v707
        %827 = vmatprep.subr.bf16.mxu0 %v712
        %828 = vmatpush1.bf16.msra.mxu0 %v711
        %829 = vmatprep.subr.bf16.mxu0 %v716
        %830 = vmatpush1.bf16.msra.mxu0 %v715
        %831 = vmatprep.subr.bf16.mxu0 %v720
        %832 = vmatpush1.bf16.msra.mxu0 %v719
        %833 = vmatprep.subr.bf16.mxu0 %v724
        %834 = vmatpush1.bf16.msra.mxu0 %v723
        %835 = vmatprep.subr.bf16.mxu0 %v728
        %836 = vmatpush1.bf16.msra.mxu0 %v727
        %837 = vmatprep.subr.bf16.mxu0 %v732
        %838 = vmatpush1.bf16.msra.mxu0 %v731
        %839 = vmatprep.subr.bf16.mxu0 %v736
        %840 = vmatpush1.bf16.msra.mxu0 %v735
        %841 = vmatprep.subr.bf16.mxu0 %v740
        %842 = vmatpush1.bf16.msra.mxu0 %v739
        %843 = vmatprep.subr.bf16.mxu0 %v744
        %844 = vmatpush1.bf16.msra.mxu0 %v743
        %845 = vmatprep.subr.bf16.mxu0 %v748
        %846 = vmatpush1.bf16.msra.mxu0 %v747
        %847 = vmatprep.mubr.bf16.mxu0 %v408
        %848 = vmatmul.mubr.bf16.gmra.mrb[0].mxu0 %v407
        %v849 = vpop.f32.mrb[0].mxu0
        %v850 = vadd.f32 %v478, %v849
        %v851 = vpop.f32.mrb[0].mxu0
        %v852 = vadd.f32 %v482, %v851
        %v853 = vpop.f32.mrb[0].mxu0
        %v854 = vpop.f32.mrb[0].mxu0
        %855 = vdwg.mxu0
        %856 = vmatprep.subr.bf16.mxu0 %v690
        %857 = vmatpush1.bf16.msra.mxu0 %v689
        %858 = vmatprep.subr.bf16.mxu0 %v694
        %859 = vmatpush1.bf16.msra.mxu0 %v693
        %860 = vmatprep.subr.bf16.mxu0 %v698
        %861 = vmatpush1.bf16.msra.mxu0 %v697
        %862 = vmatprep.subr.bf16.mxu0 %v702
        %863 = vmatpush1.bf16.msra.mxu0 %v701
        %864 = vmatprep.subr.bf16.mxu0 %v706
        %865 = vmatpush1.bf16.msra.mxu0 %v705
        %866 = vmatprep.subr.bf16.mxu0 %v710
        %867 = vmatpush1.bf16.msra.mxu0 %v709
        %868 = vmatprep.subr.bf16.mxu0 %v714
        %869 = vmatpush1.bf16.msra.mxu0 %v713
        %870 = vmatprep.subr.bf16.mxu0 %v718
        %871 = vmatpush1.bf16.msra.mxu0 %v717
        %872 = vmatprep.subr.bf16.mxu0 %v722
        %873 = vmatpush1.bf16.msra.mxu0 %v721
        %874 = vmatprep.subr.bf16.mxu0 %v726
        %875 = vmatpush1.bf16.msra.mxu0 %v725
        %876 = vmatprep.subr.bf16.mxu0 %v730
        %877 = vmatpush1.bf16.msra.mxu0 %v729
        %878 = vmatprep.subr.bf16.mxu0 %v734
        %879 = vmatpush1.bf16.msra.mxu0 %v733
        %880 = vmatprep.subr.bf16.mxu0 %v738
        %881 = vmatpush1.bf16.msra.mxu0 %v737
        %882 = vmatprep.subr.bf16.mxu0 %v742
        %883 = vmatpush1.bf16.msra.mxu0 %v741
        %884 = vmatprep.subr.bf16.mxu0 %v746
        %885 = vmatpush1.bf16.msra.mxu0 %v745
        %886 = vmatprep.subr.bf16.mxu0 %v750
        %887 = vmatpush1.bf16.msra.mxu0 %v749
        %888 = vmatprep.mubr.bf16.mxu0 %v408
        %889 = vmatmul.mubr.bf16.gmra.mrb[0].mxu0 %v407
        %v890 = vpop.f32.mrb[0].mxu0
        %v891 = vadd.f32 %v486, %v890
        %v892 = vpop.f32.mrb[0].mxu0
        %v893 = vadd.f32 %v490, %v892
        %v894 = vpop.f32.mrb[0].mxu0
        %v895 = vpop.f32.mrb[0].mxu0
        %896 = vdwg.mxu0
        %v897 = vmax.f32 %v850, 0.0
        %v898 = vmax.f32 %v852, 0.0
        %v899 = vmax.f32 %v891, 0.0
        %v900 = vmax.f32 %v893, 0.0
        %v901 = vpack.c.bf16 %v897, %v897
        %v902 = vpack.c.bf16 %v898, %v898
        %v903 = vpack.c.bf16 %v899, %v899
        %v904 = vpack.c.bf16 %v900, %v900
        %v905 = vld [vmem:[%s6] sm:$0xff]
        %v906 = vld [vmem:[%s6 + $0x8] sm:$0xff]
        %v907 = vld [vmem:[%s6 + $0x10] sm:$0xff]
        %v908 = vld [vmem:[%s6 + $0x18] sm:$0xf]
        %v909 = vld [vmem:[%s6 + $0x1c] sm:$0xff]
        %v910 = vld [vmem:[%s6 + $0x24] sm:$0xff]
        %v911 = vld [vmem:[%s6 + $0x2c] sm:$0xff]
        %v912 = vld [vmem:[%s6 + $0x34] sm:$0xf]
        %v913 = vld [vmem:[%s6 + $0x38] sm:$0xff]
        %v914 = vld [vmem:[%s6 + $0x40] sm:$0xff]
        %v915 = vld [vmem:[%s6 + $0x48] sm:$0xff]
        %v916 = vld [vmem:[%s6 + $0x50] sm:$0xf]
        %v917 = vld [vmem:[%s6 + $0x54] sm:$0xff]
        %v918 = vld [vmem:[%s6 + $0x5c] sm:$0xff]
        %v919 = vld [vmem:[%s6 + $0x64] sm:$0xff]
        %v920 = vld [vmem:[%s6 + $0x6c] sm:$0xf]
        %v921 = vld [vmem:[%s6 + $0x70] sm:$0xff]
        %v922 = vld [vmem:[%s6 + $0x78] sm:$0xff]
        %v923 = vld [vmem:[%s6 + $0x80] sm:$0xff]
        %v924 = vld [vmem:[%s6 + $0x88] sm:$0xf]
        %v925 = vld [vmem:[%s6 + $0x8c] sm:$0xff]
        %v926 = vld [vmem:[%s6 + $0x94] sm:$0xff]
        %v927 = vld [vmem:[%s6 + $0x9c] sm:$0xff]
        %v928 = vld [vmem:[%s6 + $0xa4] sm:$0xf]
        %v929 = vld [vmem:[%s6 + $0xa8] sm:$0xff]
        %v930 = vld [vmem:[%s6 + $0xb0] sm:$0xff]
        %v931 = vld [vmem:[%s6 + $0xb8] sm:$0xff]
        %v932 = vld [vmem:[%s6 + $0xc0] sm:$0xf]
        %v933 = vld [vmem:[%s6 + $0xc4] sm:$0xff]
        %v934 = vld [vmem:[%s6 + $0xcc] sm:$0xff]
        %v935 = vld [vmem:[%s6 + $0xd4] sm:$0xff]
        %v936 = vld [vmem:[%s6 + $0xdc] sm:$0xf]
        %v937 = vld [vmem:[%s6 + $0xe0] sm:$0xff]
        %v938 = vld [vmem:[%s6 + $0xe8] sm:$0xff]
        %v939 = vld [vmem:[%s6 + $0xf0] sm:$0xff]
        %v940 = vld [vmem:[%s6 + $0xf8] sm:$0xf]
        %v941 = vld [vmem:[%s6 + $0xfc] sm:$0xff]
        %v942 = vld [vmem:[%s6 + $0x104] sm:$0xff]
        %v943 = vld [vmem:[%s6 + $0x10c] sm:$0xff]
        %v944 = vld [vmem:[%s6 + $0x114] sm:$0xf]
        %v945 = vld [vmem:[%s6 + $0x118] sm:$0xff]
        %v946 = vld [vmem:[%s6 + $0x120] sm:$0xff]
        %v947 = vld [vmem:[%s6 + $0x128] sm:$0xff]
        %v948 = vld [vmem:[%s6 + $0x130] sm:$0xf]
        %v949 = vld [vmem:[%s6 + $0x134] sm:$0xff]
        %v950 = vld [vmem:[%s6 + $0x13c] sm:$0xff]
        %v951 = vld [vmem:[%s6 + $0x144] sm:$0xff]
        %v952 = vld [vmem:[%s6 + $0x14c] sm:$0xf]
        %v953 = vld [vmem:[%s6 + $0x150] sm:$0xff]
        %v954 = vld [vmem:[%s6 + $0x158] sm:$0xff]
        %v955 = vld [vmem:[%s6 + $0x160] sm:$0xff]
        %v956 = vld [vmem:[%s6 + $0x168] sm:$0xf]
        %v957 = vld [vmem:[%s6 + $0x16c] sm:$0xff]
        %v958 = vld [vmem:[%s6 + $0x174] sm:$0xff]
        %v959 = vld [vmem:[%s6 + $0x17c] sm:$0xff]
        %v960 = vld [vmem:[%s6 + $0x184] sm:$0xf]
        %v961 = vld [vmem:[%s6 + $0x188] sm:$0xff]
        %v962 = vld [vmem:[%s6 + $0x190] sm:$0xff]
        %v963 = vld [vmem:[%s6 + $0x198] sm:$0xff]
        %v964 = vld [vmem:[%s6 + $0x1a0] sm:$0xf]
        %v965 = vld [vmem:[%s6 + $0x1a4] sm:$0xff]
        %v966 = vld [vmem:[%s6 + $0x1ac] sm:$0xff]
        %v967 = vld [vmem:[%s6 + $0x1b4] sm:$0xff]
        %v968 = vld [vmem:[%s6 + $0x1bc] sm:$0xf]
        %v969 = vld [vmem:[%s6 + $0x1c0] sm:$0xff]
        %v970 = vld [vmem:[%s6 + $0x1c8] sm:$0xff]
        %v971 = vld [vmem:[%s6 + $0x1d0] sm:$0xff]
        %v972 = vld [vmem:[%s6 + $0x1d8] sm:$0xf]
        %v973 = vld [vmem:[%s6 + $0x1dc] sm:$0xff]
        %v974 = vld [vmem:[%s6 + $0x1e4] sm:$0xff]
        %v975 = vld [vmem:[%s6 + $0x1ec] sm:$0xff]
        %v976 = vld [vmem:[%s6 + $0x1f4] sm:$0xf]
        %v977 = vld [vmem:[%s6 + $0x1f8] sm:$0xff]
        %v978 = vld [vmem:[%s6 + $0x200] sm:$0xff]
        %v979 = vld [vmem:[%s6 + $0x208] sm:$0xff]
        %v980 = vld [vmem:[%s6 + $0x210] sm:$0xf]
        %v981 = vld [vmem:[%s6 + $0x214] sm:$0xff]
        %v982 = vld [vmem:[%s6 + $0x21c] sm:$0xff]
        %v983 = vld [vmem:[%s6 + $0x224] sm:$0xff]
        %v984 = vld [vmem:[%s6 + $0x22c] sm:$0xf]
        %v985 = vld [vmem:[%s6 + $0x230] sm:$0xff]
        %v986 = vld [vmem:[%s6 + $0x238] sm:$0xff]
        %v987 = vld [vmem:[%s6 + $0x240] sm:$0xff]
        %v988 = vld [vmem:[%s6 + $0x248] sm:$0xf]
        %v989 = vld [vmem:[%s6 + $0x24c] sm:$0xff]
        %v990 = vld [vmem:[%s6 + $0x254] sm:$0xff]
        %v991 = vld [vmem:[%s6 + $0x25c] sm:$0xff]
        %v992 = vld [vmem:[%s6 + $0x264] sm:$0xf]
        %v993 = vld [vmem:[%s6 + $0x268] sm:$0xff]
        %v994 = vld [vmem:[%s6 + $0x270] sm:$0xff]
        %v995 = vld [vmem:[%s6 + $0x278] sm:$0xff]
        %v996 = vld [vmem:[%s6 + $0x280] sm:$0xf]
        %v997 = vld [vmem:[%s6 + $0x284] sm:$0xff]
        %v998 = vld [vmem:[%s6 + $0x28c] sm:$0xff]
        %v999 = vld [vmem:[%s6 + $0x294] sm:$0xff]
        %v1000 = vld [vmem:[%s6 + $0x29c] sm:$0xf]
        %v1001 = vld [vmem:[%s6 + $0x2a0] sm:$0xff]
        %v1002 = vld [vmem:[%s6 + $0x2a8] sm:$0xff]
        %v1003 = vld [vmem:[%s6 + $0x2b0] sm:$0xff]
        %v1004 = vld [vmem:[%s6 + $0x2b8] sm:$0xf]
        %v1005 = vld [vmem:[%s6 + $0x2bc] sm:$0xff]
        %v1006 = vld [vmem:[%s6 + $0x2c4] sm:$0xff]
        %v1007 = vld [vmem:[%s6 + $0x2cc] sm:$0xff]
        %v1008 = vld [vmem:[%s6 + $0x2d4] sm:$0xf]
        %v1009 = vld [vmem:[%s6 + $0x2d8] sm:$0xff]
        %v1010 = vld [vmem:[%s6 + $0x2e0] sm:$0xff]
        %v1011 = vld [vmem:[%s6 + $0x2e8] sm:$0xff]
        %v1012 = vld [vmem:[%s6 + $0x2f0] sm:$0xf]
        %v1013 = vld [vmem:[%s6 + $0x2f4] sm:$0xff]
        %v1014 = vld [vmem:[%s6 + $0x2fc] sm:$0xff]
        %v1015 = vld [vmem:[%s6 + $0x304] sm:$0xff]
        %v1016 = vld [vmem:[%s6 + $0x30c] sm:$0xf]
        %v1017 = vld [vmem:[%s6 + $0x310] sm:$0xff]
        %v1018 = vld [vmem:[%s6 + $0x318] sm:$0xff]
        %v1019 = vld [vmem:[%s6 + $0x320] sm:$0xff]
        %v1020 = vld [vmem:[%s6 + $0x328] sm:$0xf]
        %v1021 = vld [vmem:[%s6 + $0x32c] sm:$0xff]
        %v1022 = vld [vmem:[%s6 + $0x334] sm:$0xff]
        %v1023 = vld [vmem:[%s6 + $0x33c] sm:$0xff]
        %v1024 = vld [vmem:[%s6 + $0x344] sm:$0xf]
        %v1025 = vld [vmem:[%s6 + $0x348] sm:$0xff]
        %v1026 = vld [vmem:[%s6 + $0x350] sm:$0xff]
        %v1027 = vld [vmem:[%s6 + $0x358] sm:$0xff]
        %v1028 = vld [vmem:[%s6 + $0x360] sm:$0xf]
        %v1029 = vld [vmem:[%s6 + $0x364] sm:$0xff]
        %v1030 = vld [vmem:[%s6 + $0x36c] sm:$0xff]
        %v1031 = vld [vmem:[%s6 + $0x374] sm:$0xff]
        %v1032 = vld [vmem:[%s6 + $0x37c] sm:$0xf]
        %v1033 = vld [vmem:[%s6 + $0x380] sm:$0xff]
        %v1034 = vld [vmem:[%s6 + $0x388] sm:$0xff]
        %v1035 = vld [vmem:[%s6 + $0x390] sm:$0xff]
        %v1036 = vld [vmem:[%s6 + $0x398] sm:$0xf]
        %v1037 = vld [vmem:[%s6 + $0x39c] sm:$0xff]
        %v1038 = vld [vmem:[%s6 + $0x3a4] sm:$0xff]
        %v1039 = vld [vmem:[%s6 + $0x3ac] sm:$0xff]
        %v1040 = vld [vmem:[%s6 + $0x3b4] sm:$0xf]
        %v1041 = vld [vmem:[%s6 + $0x3b8] sm:$0xff]
        %v1042 = vld [vmem:[%s6 + $0x3c0] sm:$0xff]
        %v1043 = vld [vmem:[%s6 + $0x3c8] sm:$0xff]
        %v1044 = vld [vmem:[%s6 + $0x3d0] sm:$0xf]
        %v1045 = vld [vmem:[%s6 + $0x3d4] sm:$0xff]
        %v1046 = vld [vmem:[%s6 + $0x3dc] sm:$0xff]
        %v1047 = vld [vmem:[%s6 + $0x3e4] sm:$0xff]
        %v1048 = vld [vmem:[%s6 + $0x3ec] sm:$0xf]
        %v1049 = vld [vmem:[%s6 + $0x3f0] sm:$0xff]
        %v1050 = vld [vmem:[%s6 + $0x3f8] sm:$0xff]
        %v1051 = vld [vmem:[%s6 + $0x400] sm:$0xff]
        %v1052 = vld [vmem:[%s6 + $0x408] sm:$0xf]
        %v1053 = vld [vmem:[%s6 + $0x40c] sm:$0xff]
        %v1054 = vld [vmem:[%s6 + $0x414] sm:$0xff]
        %v1055 = vld [vmem:[%s6 + $0x41c] sm:$0xff]
        %v1056 = vld [vmem:[%s6 + $0x424] sm:$0xf]
        %v1057 = vld [vmem:[%s6 + $0x428] sm:$0xff]
        %v1058 = vld [vmem:[%s6 + $0x430] sm:$0xff]
        %v1059 = vld [vmem:[%s6 + $0x438] sm:$0xff]
        %v1060 = vld [vmem:[%s6 + $0x440] sm:$0xf]
        %v1061 = vld [vmem:[%s6 + $0x444] sm:$0xff]
        %v1062 = vld [vmem:[%s6 + $0x44c] sm:$0xff]
        %v1063 = vld [vmem:[%s6 + $0x454] sm:$0xff]
        %v1064 = vld [vmem:[%s6 + $0x45c] sm:$0xf]
        %v1065 = vld [vmem:[%s6 + $0x460] sm:$0xff]
        %v1066 = vld [vmem:[%s6 + $0x468] sm:$0xff]
        %v1067 = vld [vmem:[%s6 + $0x470] sm:$0xff]
        %v1068 = vld [vmem:[%s6 + $0x478] sm:$0xf]
        %v1069 = vld [vmem:[%s6 + $0x47c] sm:$0xff]
        %v1070 = vld [vmem:[%s6 + $0x484] sm:$0xff]
        %v1071 = vld [vmem:[%s6 + $0x48c] sm:$0xff]
        %v1072 = vld [vmem:[%s6 + $0x494] sm:$0xf]
        %v1073 = vld [vmem:[%s6 + $0x498] sm:$0xff]
        %v1074 = vld [vmem:[%s6 + $0x4a0] sm:$0xff]
        %v1075 = vld [vmem:[%s6 + $0x4a8] sm:$0xff]
        %v1076 = vld [vmem:[%s6 + $0x4b0] sm:$0xf]
        %v1077 = vld [vmem:[%s6 + $0x4b4] sm:$0xff]
        %v1078 = vld [vmem:[%s6 + $0x4bc] sm:$0xff]
        %v1079 = vld [vmem:[%s6 + $0x4c4] sm:$0xff]
        %v1080 = vld [vmem:[%s6 + $0x4cc] sm:$0xf]
        %v1081 = vld [vmem:[%s6 + $0x4d0] sm:$0xff]
        %v1082 = vld [vmem:[%s6 + $0x4d8] sm:$0xff]
        %v1083 = vld [vmem:[%s6 + $0x4e0] sm:$0xff]
        %v1084 = vld [vmem:[%s6 + $0x4e8] sm:$0xf]
        %v1085 = vld [vmem:[%s6 + $0x4ec] sm:$0xff]
        %v1086 = vld [vmem:[%s6 + $0x4f4] sm:$0xff]
        %v1087 = vld [vmem:[%s6 + $0x4fc] sm:$0xff]
        %v1088 = vld [vmem:[%s6 + $0x504] sm:$0xf]
        %v1089 = vld [vmem:[%s6 + $0x508] sm:$0xff]
        %v1090 = vld [vmem:[%s6 + $0x510] sm:$0xff]
        %v1091 = vld [vmem:[%s6 + $0x518] sm:$0xff]
        %v1092 = vld [vmem:[%s6 + $0x520] sm:$0xf]
        %v1093 = vld [vmem:[%s6 + $0x524] sm:$0xff]
        %v1094 = vld [vmem:[%s6 + $0x52c] sm:$0xff]
        %v1095 = vld [vmem:[%s6 + $0x534] sm:$0xff]
        %v1096 = vld [vmem:[%s6 + $0x53c] sm:$0xf]
        %v1097 = vld [vmem:[%s6 + $0x540] sm:$0xff]
        %v1098 = vld [vmem:[%s6 + $0x548] sm:$0xff]
        %v1099 = vld [vmem:[%s6 + $0x550] sm:$0xff]
        %v1100 = vld [vmem:[%s6 + $0x558] sm:$0xf]
        %v1101 = vld [vmem:[%s6 + $0x55c] sm:$0xff]
        %v1102 = vld [vmem:[%s6 + $0x564] sm:$0xff]
        %v1103 = vld [vmem:[%s6 + $0x56c] sm:$0xff]
        %v1104 = vld [vmem:[%s6 + $0x574] sm:$0xf]
        %v1105 = vld [vmem:[%s6 + $0x578] sm:$0xff]
        %v1106 = vld [vmem:[%s6 + $0x580] sm:$0xff]
        %v1107 = vld [vmem:[%s6 + $0x588] sm:$0xff]
        %v1108 = vld [vmem:[%s6 + $0x590] sm:$0xf]
        %v1109 = vld [vmem:[%s6 + $0x594] sm:$0xff]
        %v1110 = vld [vmem:[%s6 + $0x59c] sm:$0xff]
        %v1111 = vld [vmem:[%s6 + $0x5a4] sm:$0xff]
        %v1112 = vld [vmem:[%s6 + $0x5ac] sm:$0xf]
        %v1113 = vld [vmem:[%s6 + $0x5b0] sm:$0xff]
        %v1114 = vld [vmem:[%s6 + $0x5b8] sm:$0xff]
        %v1115 = vld [vmem:[%s6 + $0x5c0] sm:$0xff]
        %v1116 = vld [vmem:[%s6 + $0x5c8] sm:$0xf]
        %v1117 = vld [vmem:[%s6 + $0x5cc] sm:$0xff]
        %v1118 = vld [vmem:[%s6 + $0x5d4] sm:$0xff]
        %v1119 = vld [vmem:[%s6 + $0x5dc] sm:$0xff]
        %v1120 = vld [vmem:[%s6 + $0x5e4] sm:$0xf]
        %v1121 = vld [vmem:[%s6 + $0x5e8] sm:$0xff]
        %v1122 = vld [vmem:[%s6 + $0x5f0] sm:$0xff]
        %v1123 = vld [vmem:[%s6 + $0x5f8] sm:$0xff]
        %v1124 = vld [vmem:[%s6 + $0x600] sm:$0xf]
        %v1125 = vld [vmem:[%s6 + $0x604] sm:$0xff]
        %v1126 = vld [vmem:[%s6 + $0x60c] sm:$0xff]
        %v1127 = vld [vmem:[%s6 + $0x614] sm:$0xff]
        %v1128 = vld [vmem:[%s6 + $0x61c] sm:$0xf]
        %v1129 = vld [vmem:[%s6 + $0x620] sm:$0xff]
        %v1130 = vld [vmem:[%s6 + $0x628] sm:$0xff]
        %v1131 = vld [vmem:[%s6 + $0x630] sm:$0xff]
        %v1132 = vld [vmem:[%s6 + $0x638] sm:$0xf]
        %v1133 = vld [vmem:[%s6 + $0x63c] sm:$0xff]
        %v1134 = vld [vmem:[%s6 + $0x644] sm:$0xff]
        %v1135 = vld [vmem:[%s6 + $0x64c] sm:$0xff]
        %v1136 = vld [vmem:[%s6 + $0x654] sm:$0xf]
        %v1137 = vld [vmem:[%s6 + $0x658] sm:$0xff]
        %v1138 = vld [vmem:[%s6 + $0x660] sm:$0xff]
        %v1139 = vld [vmem:[%s6 + $0x668] sm:$0xff]
        %v1140 = vld [vmem:[%s6 + $0x670] sm:$0xf]
        %v1141 = vld [vmem:[%s6 + $0x674] sm:$0xff]
        %v1142 = vld [vmem:[%s6 + $0x67c] sm:$0xff]
        %v1143 = vld [vmem:[%s6 + $0x684] sm:$0xff]
        %v1144 = vld [vmem:[%s6 + $0x68c] sm:$0xf]
        %v1145 = vld [vmem:[%s6 + $0x690] sm:$0xff]
        %v1146 = vld [vmem:[%s6 + $0x698] sm:$0xff]
        %v1147 = vld [vmem:[%s6 + $0x6a0] sm:$0xff]
        %v1148 = vld [vmem:[%s6 + $0x6a8] sm:$0xf]
        %v1149 = vld [vmem:[%s6 + $0x6ac] sm:$0xff]
        %v1150 = vld [vmem:[%s6 + $0x6b4] sm:$0xff]
        %v1151 = vld [vmem:[%s6 + $0x6bc] sm:$0xff]
        %v1152 = vld [vmem:[%s6 + $0x6c4] sm:$0xf]
        %v1153 = vld [vmem:[%s6 + $0x6c8] sm:$0xff]
        %v1154 = vld [vmem:[%s6 + $0x6d0] sm:$0xff]
        %v1155 = vld [vmem:[%s6 + $0x6d8] sm:$0xff]
        %v1156 = vld [vmem:[%s6 + $0x6e0] sm:$0xf]
        %v1157 = vld [vmem:[%s6 + $0x6e4] sm:$0xff]
        %v1158 = vld [vmem:[%s6 + $0x6ec] sm:$0xff]
        %v1159 = vld [vmem:[%s6 + $0x6f4] sm:$0xff]
        %v1160 = vld [vmem:[%s6 + $0x6fc] sm:$0xf]
        %v1161 = vld [vmem:[%s7] sm:$0x7f]
        %v1163 = vlaneseq
        %v1164 = vshrl.u32 %v1163, 7
        %v1165 = vsub.s32 0, %v1164
        %v1166 = vrot.slane %v1161, %v1165
        %v1167 = vlaneseq
        %v1168 = vshrl.u32 %v1167, 7
        %v1169 = vsub.s32 1, %v1168
        %v1170 = vrot.slane %v1161, %v1169
        %v1171 = vlaneseq
        %v1172 = vshrl.u32 %v1171, 7
        %v1173 = vsub.s32 2, %v1172
        %v1174 = vrot.slane %v1161, %v1173
        %v1175 = vlaneseq
        %v1176 = vshrl.u32 %v1175, 7
        %v1177 = vsub.s32 3, %v1176
        %v1178 = vrot.slane %v1161, %v1177
        %v1179 = vlaneseq
        %v1180 = vshrl.u32 %v1179, 7
        %v1181 = vsub.s32 4, %v1180
        %v1182 = vrot.slane %v1161, %v1181
        %v1183 = vlaneseq
        %v1184 = vshrl.u32 %v1183, 7
        %v1185 = vsub.s32 5, %v1184
        %v1186 = vrot.slane %v1161, %v1185
        %v1187 = vlaneseq
        %v1188 = vshrl.u32 %v1187, 7
        %v1189 = vsub.s32 6, %v1188
        %v1190 = vrot.slane %v1161, %v1189
        %v1454 = vunpack.c.l.b16 %v905
        %v1455 = vunpack.c.h.b16 %v905
        %v1456 = vunpack.c.l.b16 %v906
        %v1457 = vunpack.c.h.b16 %v906
        %v1458 = vunpack.c.l.b16 %v907
        %v1459 = vunpack.c.h.b16 %v907
        %v1460 = vunpack.c.l.b16 %v908
        %v1461 = vunpack.c.l.b16 %v909
        %v1462 = vunpack.c.h.b16 %v909
        %v1463 = vunpack.c.l.b16 %v910
        %v1464 = vunpack.c.h.b16 %v910
        %v1465 = vunpack.c.l.b16 %v911
        %v1466 = vunpack.c.h.b16 %v911
        %v1467 = vunpack.c.l.b16 %v912
        %v1468 = vunpack.c.l.b16 %v913
        %v1469 = vunpack.c.h.b16 %v913
        %v1470 = vunpack.c.l.b16 %v914
        %v1471 = vunpack.c.h.b16 %v914
        %v1472 = vunpack.c.l.b16 %v915
        %v1473 = vunpack.c.h.b16 %v915
        %v1474 = vunpack.c.l.b16 %v916
        %v1475 = vunpack.c.l.b16 %v917
        %v1476 = vunpack.c.h.b16 %v917
        %v1477 = vunpack.c.l.b16 %v918
        %v1478 = vunpack.c.h.b16 %v918
        %v1479 = vunpack.c.l.b16 %v919
        %v1480 = vunpack.c.h.b16 %v919
        %v1481 = vunpack.c.l.b16 %v920
        %v1482 = vunpack.c.l.b16 %v921
        %v1483 = vunpack.c.h.b16 %v921
        %v1484 = vunpack.c.l.b16 %v922
        %v1485 = vunpack.c.h.b16 %v922
        %v1486 = vunpack.c.l.b16 %v923
        %v1487 = vunpack.c.h.b16 %v923
        %v1488 = vunpack.c.l.b16 %v924
        %v1489 = vunpack.c.l.b16 %v925
        %v1490 = vunpack.c.h.b16 %v925
        %v1491 = vunpack.c.l.b16 %v926
        %v1492 = vunpack.c.h.b16 %v926
        %v1493 = vunpack.c.l.b16 %v927
        %v1494 = vunpack.c.h.b16 %v927
        %v1495 = vunpack.c.l.b16 %v928
        %v1496 = vunpack.c.l.b16 %v929
        %v1497 = vunpack.c.h.b16 %v929
        %v1498 = vunpack.c.l.b16 %v930
        %v1499 = vunpack.c.h.b16 %v930
        %v1500 = vunpack.c.l.b16 %v931
        %v1501 = vunpack.c.h.b16 %v931
        %v1502 = vunpack.c.l.b16 %v932
        %v1503 = vunpack.c.l.b16 %v933
        %v1504 = vunpack.c.h.b16 %v933
        %v1505 = vunpack.c.l.b16 %v934
        %v1506 = vunpack.c.h.b16 %v934
        %v1507 = vunpack.c.l.b16 %v935
        %v1508 = vunpack.c.h.b16 %v935
        %v1509 = vunpack.c.l.b16 %v936
        %v1510 = vunpack.c.l.b16 %v937
        %v1511 = vunpack.c.h.b16 %v937
        %v1512 = vunpack.c.l.b16 %v938
        %v1513 = vunpack.c.h.b16 %v938
        %v1514 = vunpack.c.l.b16 %v939
        %v1515 = vunpack.c.h.b16 %v939
        %v1516 = vunpack.c.l.b16 %v940
        %v1517 = vunpack.c.l.b16 %v941
        %v1518 = vunpack.c.h.b16 %v941
        %v1519 = vunpack.c.l.b16 %v942
        %v1520 = vunpack.c.h.b16 %v942
        %v1521 = vunpack.c.l.b16 %v943
        %v1522 = vunpack.c.h.b16 %v943
        %v1523 = vunpack.c.l.b16 %v944
        %v1524 = vunpack.c.l.b16 %v945
        %v1525 = vunpack.c.h.b16 %v945
        %v1526 = vunpack.c.l.b16 %v946
        %v1527 = vunpack.c.h.b16 %v946
        %v1528 = vunpack.c.l.b16 %v947
        %v1529 = vunpack.c.h.b16 %v947
        %v1530 = vunpack.c.l.b16 %v948
        %v1531 = vunpack.c.l.b16 %v949
        %v1532 = vunpack.c.h.b16 %v949
        %v1533 = vunpack.c.l.b16 %v950
        %v1534 = vunpack.c.h.b16 %v950
        %v1535 = vunpack.c.l.b16 %v951
        %v1536 = vunpack.c.h.b16 %v951
        %v1537 = vunpack.c.l.b16 %v952
        %v1538 = vunpack.c.l.b16 %v953
        %v1539 = vunpack.c.h.b16 %v953
        %v1540 = vunpack.c.l.b16 %v954
        %v1541 = vunpack.c.h.b16 %v954
        %v1542 = vunpack.c.l.b16 %v955
        %v1543 = vunpack.c.h.b16 %v955
        %v1544 = vunpack.c.l.b16 %v956
        %v1545 = vunpack.c.l.b16 %v957
        %v1546 = vunpack.c.h.b16 %v957
        %v1547 = vunpack.c.l.b16 %v958
        %v1548 = vunpack.c.h.b16 %v958
        %v1549 = vunpack.c.l.b16 %v959
        %v1550 = vunpack.c.h.b16 %v959
        %v1551 = vunpack.c.l.b16 %v960
        %v1552 = vunpack.c.l.b16 %v961
        %v1553 = vunpack.c.h.b16 %v961
        %v1554 = vunpack.c.l.b16 %v962
        %v1555 = vunpack.c.h.b16 %v962
        %v1556 = vunpack.c.l.b16 %v963
        %v1557 = vunpack.c.h.b16 %v963
        %v1558 = vunpack.c.l.b16 %v964
        %v1559 = vunpack.c.l.b16 %v965
        %v1560 = vunpack.c.h.b16 %v965
        %v1561 = vunpack.c.l.b16 %v966
        %v1562 = vunpack.c.h.b16 %v966
        %v1563 = vunpack.c.l.b16 %v967
        %v1564 = vunpack.c.h.b16 %v967
        %v1565 = vunpack.c.l.b16 %v968
        %v1566 = vunpack.c.l.b16 %v969
        %v1567 = vunpack.c.h.b16 %v969
        %v1568 = vunpack.c.l.b16 %v970
        %v1569 = vunpack.c.h.b16 %v970
        %v1570 = vunpack.c.l.b16 %v971
        %v1571 = vunpack.c.h.b16 %v971
        %v1572 = vunpack.c.l.b16 %v972
        %v1573 = vunpack.c.l.b16 %v973
        %v1574 = vunpack.c.h.b16 %v973
        %v1575 = vunpack.c.l.b16 %v974
        %v1576 = vunpack.c.h.b16 %v974
        %v1577 = vunpack.c.l.b16 %v975
        %v1578 = vunpack.c.h.b16 %v975
        %v1579 = vunpack.c.l.b16 %v976
        %v1580 = vunpack.c.l.b16 %v977
        %v1581 = vunpack.c.h.b16 %v977
        %v1582 = vunpack.c.l.b16 %v978
        %v1583 = vunpack.c.h.b16 %v978
        %v1584 = vunpack.c.l.b16 %v979
        %v1585 = vunpack.c.h.b16 %v979
        %v1586 = vunpack.c.l.b16 %v980
        %v1587 = vunpack.c.l.b16 %v981
        %v1588 = vunpack.c.h.b16 %v981
        %v1589 = vunpack.c.l.b16 %v982
        %v1590 = vunpack.c.h.b16 %v982
        %v1591 = vunpack.c.l.b16 %v983
        %v1592 = vunpack.c.h.b16 %v983
        %v1593 = vunpack.c.l.b16 %v984
        %v1594 = vunpack.c.l.b16 %v985
        %v1595 = vunpack.c.h.b16 %v985
        %v1596 = vunpack.c.l.b16 %v986
        %v1597 = vunpack.c.h.b16 %v986
        %v1598 = vunpack.c.l.b16 %v987
        %v1599 = vunpack.c.h.b16 %v987
        %v1600 = vunpack.c.l.b16 %v988
        %v1601 = vunpack.c.l.b16 %v989
        %v1602 = vunpack.c.h.b16 %v989
        %v1603 = vunpack.c.l.b16 %v990
        %v1604 = vunpack.c.h.b16 %v990
        %v1605 = vunpack.c.l.b16 %v991
        %v1606 = vunpack.c.h.b16 %v991
        %v1607 = vunpack.c.l.b16 %v992
        %v1608 = vunpack.c.l.b16 %v993
        %v1609 = vunpack.c.h.b16 %v993
        %v1610 = vunpack.c.l.b16 %v994
        %v1611 = vunpack.c.h.b16 %v994
        %v1612 = vunpack.c.l.b16 %v995
        %v1613 = vunpack.c.h.b16 %v995
        %v1614 = vunpack.c.l.b16 %v996
        %v1615 = vunpack.c.l.b16 %v997
        %v1616 = vunpack.c.h.b16 %v997
        %v1617 = vunpack.c.l.b16 %v998
        %v1618 = vunpack.c.h.b16 %v998
        %v1619 = vunpack.c.l.b16 %v999
        %v1620 = vunpack.c.h.b16 %v999
        %v1621 = vunpack.c.l.b16 %v1000
        %v1622 = vunpack.c.l.b16 %v1001
        %v1623 = vunpack.c.h.b16 %v1001
        %v1624 = vunpack.c.l.b16 %v1002
        %v1625 = vunpack.c.h.b16 %v1002
        %v1626 = vunpack.c.l.b16 %v1003
        %v1627 = vunpack.c.h.b16 %v1003
        %v1628 = vunpack.c.l.b16 %v1004
        %v1629 = vunpack.c.l.b16 %v1005
        %v1630 = vunpack.c.h.b16 %v1005
        %v1631 = vunpack.c.l.b16 %v1006
        %v1632 = vunpack.c.h.b16 %v1006
        %v1633 = vunpack.c.l.b16 %v1007
        %v1634 = vunpack.c.h.b16 %v1007
        %v1635 = vunpack.c.l.b16 %v1008
        %v1636 = vunpack.c.l.b16 %v1009
        %v1637 = vunpack.c.h.b16 %v1009
        %v1638 = vunpack.c.l.b16 %v1010
        %v1639 = vunpack.c.h.b16 %v1010
        %v1640 = vunpack.c.l.b16 %v1011
        %v1641 = vunpack.c.h.b16 %v1011
        %v1642 = vunpack.c.l.b16 %v1012
        %v1643 = vunpack.c.l.b16 %v1013
        %v1644 = vunpack.c.h.b16 %v1013
        %v1645 = vunpack.c.l.b16 %v1014
        %v1646 = vunpack.c.h.b16 %v1014
        %v1647 = vunpack.c.l.b16 %v1015
        %v1648 = vunpack.c.h.b16 %v1015
        %v1649 = vunpack.c.l.b16 %v1016
        %v1650 = vunpack.c.l.b16 %v1017
        %v1651 = vunpack.c.h.b16 %v1017
        %v1652 = vunpack.c.l.b16 %v1018
        %v1653 = vunpack.c.h.b16 %v1018
        %v1654 = vunpack.c.l.b16 %v1019
        %v1655 = vunpack.c.h.b16 %v1019
        %v1656 = vunpack.c.l.b16 %v1020
        %v1657 = vunpack.c.l.b16 %v1021
        %v1658 = vunpack.c.h.b16 %v1021
        %v1659 = vunpack.c.l.b16 %v1022
        %v1660 = vunpack.c.h.b16 %v1022
        %v1661 = vunpack.c.l.b16 %v1023
        %v1662 = vunpack.c.h.b16 %v1023
        %v1663 = vunpack.c.l.b16 %v1024
        %v1664 = vunpack.c.l.b16 %v1025
        %v1665 = vunpack.c.h.b16 %v1025
        %v1666 = vunpack.c.l.b16 %v1026
        %v1667 = vunpack.c.h.b16 %v1026
        %v1668 = vunpack.c.l.b16 %v1027
        %v1669 = vunpack.c.h.b16 %v1027
        %v1670 = vunpack.c.l.b16 %v1028
        %v1671 = vunpack.c.l.b16 %v1029
        %v1672 = vunpack.c.h.b16 %v1029
        %v1673 = vunpack.c.l.b16 %v1030
        %v1674 = vunpack.c.h.b16 %v1030
        %v1675 = vunpack.c.l.b16 %v1031
        %v1676 = vunpack.c.h.b16 %v1031
        %v1677 = vunpack.c.l.b16 %v1032
        %v1678 = vunpack.c.l.b16 %v1033
        %v1679 = vunpack.c.h.b16 %v1033
        %v1680 = vunpack.c.l.b16 %v1034
        %v1681 = vunpack.c.h.b16 %v1034
        %v1682 = vunpack.c.l.b16 %v1035
        %v1683 = vunpack.c.h.b16 %v1035
        %v1684 = vunpack.c.l.b16 %v1036
        %v1685 = vunpack.c.l.b16 %v1037
        %v1686 = vunpack.c.h.b16 %v1037
        %v1687 = vunpack.c.l.b16 %v1038
        %v1688 = vunpack.c.h.b16 %v1038
        %v1689 = vunpack.c.l.b16 %v1039
        %v1690 = vunpack.c.h.b16 %v1039
        %v1691 = vunpack.c.l.b16 %v1040
        %v1692 = vunpack.c.l.b16 %v1041
        %v1693 = vunpack.c.h.b16 %v1041
        %v1694 = vunpack.c.l.b16 %v1042
        %v1695 = vunpack.c.h.b16 %v1042
        %v1696 = vunpack.c.l.b16 %v1043
        %v1697 = vunpack.c.h.b16 %v1043
        %v1698 = vunpack.c.l.b16 %v1044
        %v1699 = vunpack.c.l.b16 %v1045
        %v1700 = vunpack.c.h.b16 %v1045
        %v1701 = vunpack.c.l.b16 %v1046
        %v1702 = vunpack.c.h.b16 %v1046
        %v1703 = vunpack.c.l.b16 %v1047
        %v1704 = vunpack.c.h.b16 %v1047
        %v1705 = vunpack.c.l.b16 %v1048
        %v1706 = vunpack.c.l.b16 %v1049
        %v1707 = vunpack.c.h.b16 %v1049
        %v1708 = vunpack.c.l.b16 %v1050
        %v1709 = vunpack.c.h.b16 %v1050
        %v1710 = vunpack.c.l.b16 %v1051
        %v1711 = vunpack.c.h.b16 %v1051
        %v1712 = vunpack.c.l.b16 %v1052
        %v1713 = vunpack.c.l.b16 %v1053
        %v1714 = vunpack.c.h.b16 %v1053
        %v1715 = vunpack.c.l.b16 %v1054
        %v1716 = vunpack.c.h.b16 %v1054
        %v1717 = vunpack.c.l.b16 %v1055
        %v1718 = vunpack.c.h.b16 %v1055
        %v1719 = vunpack.c.l.b16 %v1056
        %v1720 = vunpack.c.l.b16 %v1057
        %v1721 = vunpack.c.h.b16 %v1057
        %v1722 = vunpack.c.l.b16 %v1058
        %v1723 = vunpack.c.h.b16 %v1058
        %v1724 = vunpack.c.l.b16 %v1059
        %v1725 = vunpack.c.h.b16 %v1059
        %v1726 = vunpack.c.l.b16 %v1060
        %v1727 = vunpack.c.l.b16 %v1061
        %v1728 = vunpack.c.h.b16 %v1061
        %v1729 = vunpack.c.l.b16 %v1062
        %v1730 = vunpack.c.h.b16 %v1062
        %v1731 = vunpack.c.l.b16 %v1063
        %v1732 = vunpack.c.h.b16 %v1063
        %v1733 = vunpack.c.l.b16 %v1064
        %v1734 = vunpack.c.l.b16 %v1065
        %v1735 = vunpack.c.h.b16 %v1065
        %v1736 = vunpack.c.l.b16 %v1066
        %v1737 = vunpack.c.h.b16 %v1066
        %v1738 = vunpack.c.l.b16 %v1067
        %v1739 = vunpack.c.h.b16 %v1067
        %v1740 = vunpack.c.l.b16 %v1068
        %v1741 = vunpack.c.l.b16 %v1069
        %v1742 = vunpack.c.h.b16 %v1069
        %v1743 = vunpack.c.l.b16 %v1070
        %v1744 = vunpack.c.h.b16 %v1070
        %v1745 = vunpack.c.l.b16 %v1071
        %v1746 = vunpack.c.h.b16 %v1071
        %v1747 = vunpack.c.l.b16 %v1072
        %v1748 = vunpack.c.l.b16 %v1073
        %v1749 = vunpack.c.h.b16 %v1073
        %v1750 = vunpack.c.l.b16 %v1074
        %v1751 = vunpack.c.h.b16 %v1074
        %v1752 = vunpack.c.l.b16 %v1075
        %v1753 = vunpack.c.h.b16 %v1075
        %v1754 = vunpack.c.l.b16 %v1076
        %v1755 = vunpack.c.l.b16 %v1077
        %v1756 = vunpack.c.h.b16 %v1077
        %v1757 = vunpack.c.l.b16 %v1078
        %v1758 = vunpack.c.h.b16 %v1078
        %v1759 = vunpack.c.l.b16 %v1079
        %v1760 = vunpack.c.h.b16 %v1079
        %v1761 = vunpack.c.l.b16 %v1080
        %v1762 = vunpack.c.l.b16 %v1081
        %v1763 = vunpack.c.h.b16 %v1081
        %v1764 = vunpack.c.l.b16 %v1082
        %v1765 = vunpack.c.h.b16 %v1082
        %v1766 = vunpack.c.l.b16 %v1083
        %v1767 = vunpack.c.h.b16 %v1083
        %v1768 = vunpack.c.l.b16 %v1084
        %v1769 = vunpack.c.l.b16 %v1085
        %v1770 = vunpack.c.h.b16 %v1085
        %v1771 = vunpack.c.l.b16 %v1086
        %v1772 = vunpack.c.h.b16 %v1086
        %v1773 = vunpack.c.l.b16 %v1087
        %v1774 = vunpack.c.h.b16 %v1087
        %v1775 = vunpack.c.l.b16 %v1088
        %v1776 = vunpack.c.l.b16 %v1089
        %v1777 = vunpack.c.h.b16 %v1089
        %v1778 = vunpack.c.l.b16 %v1090
        %v1779 = vunpack.c.h.b16 %v1090
        %v1780 = vunpack.c.l.b16 %v1091
        %v1781 = vunpack.c.h.b16 %v1091
        %v1782 = vunpack.c.l.b16 %v1092
        %v1783 = vunpack.c.l.b16 %v1093
        %v1784 = vunpack.c.h.b16 %v1093
        %v1785 = vunpack.c.l.b16 %v1094
        %v1786 = vunpack.c.h.b16 %v1094
        %v1787 = vunpack.c.l.b16 %v1095
        %v1788 = vunpack.c.h.b16 %v1095
        %v1789 = vunpack.c.l.b16 %v1096
        %v1790 = vunpack.c.l.b16 %v1097
        %v1791 = vunpack.c.h.b16 %v1097
        %v1792 = vunpack.c.l.b16 %v1098
        %v1793 = vunpack.c.h.b16 %v1098
        %v1794 = vunpack.c.l.b16 %v1099
        %v1795 = vunpack.c.h.b16 %v1099
        %v1796 = vunpack.c.l.b16 %v1100
        %v1797 = vunpack.c.l.b16 %v1101
        %v1798 = vunpack.c.h.b16 %v1101
        %v1799 = vunpack.c.l.b16 %v1102
        %v1800 = vunpack.c.h.b16 %v1102
        %v1801 = vunpack.c.l.b16 %v1103
        %v1802 = vunpack.c.h.b16 %v1103
        %v1803 = vunpack.c.l.b16 %v1104
        %v1804 = vunpack.c.l.b16 %v1105
        %v1805 = vunpack.c.h.b16 %v1105
        %v1806 = vunpack.c.l.b16 %v1106
        %v1807 = vunpack.c.h.b16 %v1106
        %v1808 = vunpack.c.l.b16 %v1107
        %v1809 = vunpack.c.h.b16 %v1107
        %v1810 = vunpack.c.l.b16 %v1108
        %v1811 = vunpack.c.l.b16 %v1109
        %v1812 = vunpack.c.h.b16 %v1109
        %v1813 = vunpack.c.l.b16 %v1110
        %v1814 = vunpack.c.h.b16 %v1110
        %v1815 = vunpack.c.l.b16 %v1111
        %v1816 = vunpack.c.h.b16 %v1111
        %v1817 = vunpack.c.l.b16 %v1112
        %v1818 = vunpack.c.l.b16 %v1113
        %v1819 = vunpack.c.h.b16 %v1113
        %v1820 = vunpack.c.l.b16 %v1114
        %v1821 = vunpack.c.h.b16 %v1114
        %v1822 = vunpack.c.l.b16 %v1115
        %v1823 = vunpack.c.h.b16 %v1115
        %v1824 = vunpack.c.l.b16 %v1116
        %v1825 = vunpack.c.l.b16 %v1117
        %v1826 = vunpack.c.h.b16 %v1117
        %v1827 = vunpack.c.l.b16 %v1118
        %v1828 = vunpack.c.h.b16 %v1118
        %v1829 = vunpack.c.l.b16 %v1119
        %v1830 = vunpack.c.h.b16 %v1119
        %v1831 = vunpack.c.l.b16 %v1120
        %v1832 = vunpack.c.l.b16 %v1121
        %v1833 = vunpack.c.h.b16 %v1121
        %v1834 = vunpack.c.l.b16 %v1122
        %v1835 = vunpack.c.h.b16 %v1122
        %v1836 = vunpack.c.l.b16 %v1123
        %v1837 = vunpack.c.h.b16 %v1123
        %v1838 = vunpack.c.l.b16 %v1124
        %v1839 = vunpack.c.l.b16 %v1125
        %v1840 = vunpack.c.h.b16 %v1125
        %v1841 = vunpack.c.l.b16 %v1126
        %v1842 = vunpack.c.h.b16 %v1126
        %v1843 = vunpack.c.l.b16 %v1127
        %v1844 = vunpack.c.h.b16 %v1127
        %v1845 = vunpack.c.l.b16 %v1128
        %v1846 = vunpack.c.l.b16 %v1129
        %v1847 = vunpack.c.h.b16 %v1129
        %v1848 = vunpack.c.l.b16 %v1130
        %v1849 = vunpack.c.h.b16 %v1130
        %v1850 = vunpack.c.l.b16 %v1131
        %v1851 = vunpack.c.h.b16 %v1131
        %v1852 = vunpack.c.l.b16 %v1132
        %v1853 = vunpack.c.l.b16 %v1133
        %v1854 = vunpack.c.h.b16 %v1133
        %v1855 = vunpack.c.l.b16 %v1134
        %v1856 = vunpack.c.h.b16 %v1134
        %v1857 = vunpack.c.l.b16 %v1135
        %v1858 = vunpack.c.h.b16 %v1135
        %v1859 = vunpack.c.l.b16 %v1136
        %v1860 = vunpack.c.l.b16 %v1137
        %v1861 = vunpack.c.h.b16 %v1137
        %v1862 = vunpack.c.l.b16 %v1138
        %v1863 = vunpack.c.h.b16 %v1138
        %v1864 = vunpack.c.l.b16 %v1139
        %v1865 = vunpack.c.h.b16 %v1139
        %v1866 = vunpack.c.l.b16 %v1140
        %v1867 = vunpack.c.l.b16 %v1141
        %v1868 = vunpack.c.h.b16 %v1141
        %v1869 = vunpack.c.l.b16 %v1142
        %v1870 = vunpack.c.h.b16 %v1142
        %v1871 = vunpack.c.l.b16 %v1143
        %v1872 = vunpack.c.h.b16 %v1143
        %v1873 = vunpack.c.l.b16 %v1144
        %v1874 = vunpack.c.l.b16 %v1145
        %v1875 = vunpack.c.h.b16 %v1145
        %v1876 = vunpack.c.l.b16 %v1146
        %v1877 = vunpack.c.h.b16 %v1146
        %v1878 = vunpack.c.l.b16 %v1147
        %v1879 = vunpack.c.h.b16 %v1147
        %v1880 = vunpack.c.l.b16 %v1148
        %v1881 = vunpack.c.l.b16 %v1149
        %v1882 = vunpack.c.h.b16 %v1149
        %v1883 = vunpack.c.l.b16 %v1150
        %v1884 = vunpack.c.h.b16 %v1150
        %v1885 = vunpack.c.l.b16 %v1151
        %v1886 = vunpack.c.h.b16 %v1151
        %v1887 = vunpack.c.l.b16 %v1152
        %v1888 = vunpack.c.l.b16 %v1153
        %v1889 = vunpack.c.h.b16 %v1153
        %v1890 = vunpack.c.l.b16 %v1154
        %v1891 = vunpack.c.h.b16 %v1154
        %v1892 = vunpack.c.l.b16 %v1155
        %v1893 = vunpack.c.h.b16 %v1155
        %v1894 = vunpack.c.l.b16 %v1156
        %v1895 = vunpack.c.l.b16 %v1157
        %v1896 = vunpack.c.h.b16 %v1157
        %v1897 = vunpack.c.l.b16 %v1158
        %v1898 = vunpack.c.h.b16 %v1158
        %v1899 = vunpack.c.l.b16 %v1159
        %v1900 = vunpack.c.h.b16 %v1159
        %v1901 = vunpack.c.l.b16 %v1160
        %v1902 = vpack.c.b16 %v1461, %v1454
        %v1903 = vpack.c.b16 %v1462, %v1455
        %v1904 = vpack.c.b16 %v1463, %v1456
        %v1905 = vpack.c.b16 %v1464, %v1457
        %v1906 = vpack.c.b16 %v1465, %v1458
        %v1907 = vpack.c.b16 %v1466, %v1459
        %v1908 = vpack.c.b16 %v1467, %v1460
        %v1909 = vpack.c.b16 %v1475, %v1468
        %v1910 = vpack.c.b16 %v1476, %v1469
        %v1911 = vpack.c.b16 %v1477, %v1470
        %v1912 = vpack.c.b16 %v1478, %v1471
        %v1913 = vpack.c.b16 %v1479, %v1472
        %v1914 = vpack.c.b16 %v1480, %v1473
        %v1915 = vpack.c.b16 %v1481, %v1474
        %v1916 = vpack.c.b16 %v1489, %v1482
        %v1917 = vpack.c.b16 %v1490, %v1483
        %v1918 = vpack.c.b16 %v1491, %v1484
        %v1919 = vpack.c.b16 %v1492, %v1485
        %v1920 = vpack.c.b16 %v1493, %v1486
        %v1921 = vpack.c.b16 %v1494, %v1487
        %v1922 = vpack.c.b16 %v1495, %v1488
        %v1923 = vpack.c.b16 %v1503, %v1496
        %v1924 = vpack.c.b16 %v1504, %v1497
        %v1925 = vpack.c.b16 %v1505, %v1498
        %v1926 = vpack.c.b16 %v1506, %v1499
        %v1927 = vpack.c.b16 %v1507, %v1500
        %v1928 = vpack.c.b16 %v1508, %v1501
        %v1929 = vpack.c.b16 %v1509, %v1502
        %v1930 = vpack.c.b16 %v1517, %v1510
        %v1931 = vpack.c.b16 %v1518, %v1511
        %v1932 = vpack.c.b16 %v1519, %v1512
        %v1933 = vpack.c.b16 %v1520, %v1513
        %v1934 = vpack.c.b16 %v1521, %v1514
        %v1935 = vpack.c.b16 %v1522, %v1515
        %v1936 = vpack.c.b16 %v1523, %v1516
        %v1937 = vpack.c.b16 %v1531, %v1524
        %v1938 = vpack.c.b16 %v1532, %v1525
        %v1939 = vpack.c.b16 %v1533, %v1526
        %v1940 = vpack.c.b16 %v1534, %v1527
        %v1941 = vpack.c.b16 %v1535, %v1528
        %v1942 = vpack.c.b16 %v1536, %v1529
        %v1943 = vpack.c.b16 %v1537, %v1530
        %v1944 = vpack.c.b16 %v1545, %v1538
        %v1945 = vpack.c.b16 %v1546, %v1539
        %v1946 = vpack.c.b16 %v1547, %v1540
        %v1947 = vpack.c.b16 %v1548, %v1541
        %v1948 = vpack.c.b16 %v1549, %v1542
        %v1949 = vpack.c.b16 %v1550, %v1543
        %v1950 = vpack.c.b16 %v1551, %v1544
        %v1951 = vpack.c.b16 %v1559, %v1552
        %v1952 = vpack.c.b16 %v1560, %v1553
        %v1953 = vpack.c.b16 %v1561, %v1554
        %v1954 = vpack.c.b16 %v1562, %v1555
        %v1955 = vpack.c.b16 %v1563, %v1556
        %v1956 = vpack.c.b16 %v1564, %v1557
        %v1957 = vpack.c.b16 %v1565, %v1558
        %v1958 = vpack.c.b16 %v1573, %v1566
        %v1959 = vpack.c.b16 %v1574, %v1567
        %v1960 = vpack.c.b16 %v1575, %v1568
        %v1961 = vpack.c.b16 %v1576, %v1569
        %v1962 = vpack.c.b16 %v1577, %v1570
        %v1963 = vpack.c.b16 %v1578, %v1571
        %v1964 = vpack.c.b16 %v1579, %v1572
        %v1965 = vpack.c.b16 %v1587, %v1580
        %v1966 = vpack.c.b16 %v1588, %v1581
        %v1967 = vpack.c.b16 %v1589, %v1582
        %v1968 = vpack.c.b16 %v1590, %v1583
        %v1969 = vpack.c.b16 %v1591, %v1584
        %v1970 = vpack.c.b16 %v1592, %v1585
        %v1971 = vpack.c.b16 %v1593, %v1586
        %v1972 = vpack.c.b16 %v1601, %v1594
        %v1973 = vpack.c.b16 %v1602, %v1595
        %v1974 = vpack.c.b16 %v1603, %v1596
        %v1975 = vpack.c.b16 %v1604, %v1597
        %v1976 = vpack.c.b16 %v1605, %v1598
        %v1977 = vpack.c.b16 %v1606, %v1599
        %v1978 = vpack.c.b16 %v1607, %v1600
        %v1979 = vpack.c.b16 %v1615, %v1608
        %v1980 = vpack.c.b16 %v1616, %v1609
        %v1981 = vpack.c.b16 %v1617, %v1610
        %v1982 = vpack.c.b16 %v1618, %v1611
        %v1983 = vpack.c.b16 %v1619, %v1612
        %v1984 = vpack.c.b16 %v1620, %v1613
        %v1985 = vpack.c.b16 %v1621, %v1614
        %v1986 = vpack.c.b16 %v1629, %v1622
        %v1987 = vpack.c.b16 %v1630, %v1623
        %v1988 = vpack.c.b16 %v1631, %v1624
        %v1989 = vpack.c.b16 %v1632, %v1625
        %v1990 = vpack.c.b16 %v1633, %v1626
        %v1991 = vpack.c.b16 %v1634, %v1627
        %v1992 = vpack.c.b16 %v1635, %v1628
        %v1993 = vpack.c.b16 %v1643, %v1636
        %v1994 = vpack.c.b16 %v1644, %v1637
        %v1995 = vpack.c.b16 %v1645, %v1638
        %v1996 = vpack.c.b16 %v1646, %v1639
        %v1997 = vpack.c.b16 %v1647, %v1640
        %v1998 = vpack.c.b16 %v1648, %v1641
        %v1999 = vpack.c.b16 %v1649, %v1642
        %v2000 = vpack.c.b16 %v1657, %v1650
        %v2001 = vpack.c.b16 %v1658, %v1651
        %v2002 = vpack.c.b16 %v1659, %v1652
        %v2003 = vpack.c.b16 %v1660, %v1653
        %v2004 = vpack.c.b16 %v1661, %v1654
        %v2005 = vpack.c.b16 %v1662, %v1655
        %v2006 = vpack.c.b16 %v1663, %v1656
        %v2007 = vpack.c.b16 %v1671, %v1664
        %v2008 = vpack.c.b16 %v1672, %v1665
        %v2009 = vpack.c.b16 %v1673, %v1666
        %v2010 = vpack.c.b16 %v1674, %v1667
        %v2011 = vpack.c.b16 %v1675, %v1668
        %v2012 = vpack.c.b16 %v1676, %v1669
        %v2013 = vpack.c.b16 %v1677, %v1670
        %v2014 = vpack.c.b16 %v1685, %v1678
        %v2015 = vpack.c.b16 %v1686, %v1679
        %v2016 = vpack.c.b16 %v1687, %v1680
        %v2017 = vpack.c.b16 %v1688, %v1681
        %v2018 = vpack.c.b16 %v1689, %v1682
        %v2019 = vpack.c.b16 %v1690, %v1683
        %v2020 = vpack.c.b16 %v1691, %v1684
        %v2021 = vpack.c.b16 %v1699, %v1692
        %v2022 = vpack.c.b16 %v1700, %v1693
        %v2023 = vpack.c.b16 %v1701, %v1694
        %v2024 = vpack.c.b16 %v1702, %v1695
        %v2025 = vpack.c.b16 %v1703, %v1696
        %v2026 = vpack.c.b16 %v1704, %v1697
        %v2027 = vpack.c.b16 %v1705, %v1698
        %v2028 = vpack.c.b16 %v1713, %v1706
        %v2029 = vpack.c.b16 %v1714, %v1707
        %v2030 = vpack.c.b16 %v1715, %v1708
        %v2031 = vpack.c.b16 %v1716, %v1709
        %v2032 = vpack.c.b16 %v1717, %v1710
        %v2033 = vpack.c.b16 %v1718, %v1711
        %v2034 = vpack.c.b16 %v1719, %v1712
        %v2035 = vpack.c.b16 %v1727, %v1720
        %v2036 = vpack.c.b16 %v1728, %v1721
        %v2037 = vpack.c.b16 %v1729, %v1722
        %v2038 = vpack.c.b16 %v1730, %v1723
        %v2039 = vpack.c.b16 %v1731, %v1724
        %v2040 = vpack.c.b16 %v1732, %v1725
        %v2041 = vpack.c.b16 %v1733, %v1726
        %v2042 = vpack.c.b16 %v1741, %v1734
        %v2043 = vpack.c.b16 %v1742, %v1735
        %v2044 = vpack.c.b16 %v1743, %v1736
        %v2045 = vpack.c.b16 %v1744, %v1737
        %v2046 = vpack.c.b16 %v1745, %v1738
        %v2047 = vpack.c.b16 %v1746, %v1739
        %v2048 = vpack.c.b16 %v1747, %v1740
        %v2049 = vpack.c.b16 %v1755, %v1748
        %v2050 = vpack.c.b16 %v1756, %v1749
        %v2051 = vpack.c.b16 %v1757, %v1750
        %v2052 = vpack.c.b16 %v1758, %v1751
        %v2053 = vpack.c.b16 %v1759, %v1752
        %v2054 = vpack.c.b16 %v1760, %v1753
        %v2055 = vpack.c.b16 %v1761, %v1754
        %v2056 = vpack.c.b16 %v1769, %v1762
        %v2057 = vpack.c.b16 %v1770, %v1763
        %v2058 = vpack.c.b16 %v1771, %v1764
        %v2059 = vpack.c.b16 %v1772, %v1765
        %v2060 = vpack.c.b16 %v1773, %v1766
        %v2061 = vpack.c.b16 %v1774, %v1767
        %v2062 = vpack.c.b16 %v1775, %v1768
        %v2063 = vpack.c.b16 %v1783, %v1776
        %v2064 = vpack.c.b16 %v1784, %v1777
        %v2065 = vpack.c.b16 %v1785, %v1778
        %v2066 = vpack.c.b16 %v1786, %v1779
        %v2067 = vpack.c.b16 %v1787, %v1780
        %v2068 = vpack.c.b16 %v1788, %v1781
        %v2069 = vpack.c.b16 %v1789, %v1782
        %v2070 = vpack.c.b16 %v1797, %v1790
        %v2071 = vpack.c.b16 %v1798, %v1791
        %v2072 = vpack.c.b16 %v1799, %v1792
        %v2073 = vpack.c.b16 %v1800, %v1793
        %v2074 = vpack.c.b16 %v1801, %v1794
        %v2075 = vpack.c.b16 %v1802, %v1795
        %v2076 = vpack.c.b16 %v1803, %v1796
        %v2077 = vpack.c.b16 %v1811, %v1804
        %v2078 = vpack.c.b16 %v1812, %v1805
        %v2079 = vpack.c.b16 %v1813, %v1806
        %v2080 = vpack.c.b16 %v1814, %v1807
        %v2081 = vpack.c.b16 %v1815, %v1808
        %v2082 = vpack.c.b16 %v1816, %v1809
        %v2083 = vpack.c.b16 %v1817, %v1810
        %v2084 = vpack.c.b16 %v1825, %v1818
        %v2085 = vpack.c.b16 %v1826, %v1819
        %v2086 = vpack.c.b16 %v1827, %v1820
        %v2087 = vpack.c.b16 %v1828, %v1821
        %v2088 = vpack.c.b16 %v1829, %v1822
        %v2089 = vpack.c.b16 %v1830, %v1823
        %v2090 = vpack.c.b16 %v1831, %v1824
        %v2091 = vpack.c.b16 %v1839, %v1832
        %v2092 = vpack.c.b16 %v1840, %v1833
        %v2093 = vpack.c.b16 %v1841, %v1834
        %v2094 = vpack.c.b16 %v1842, %v1835
        %v2095 = vpack.c.b16 %v1843, %v1836
        %v2096 = vpack.c.b16 %v1844, %v1837
        %v2097 = vpack.c.b16 %v1845, %v1838
        %v2098 = vpack.c.b16 %v1853, %v1846
        %v2099 = vpack.c.b16 %v1854, %v1847
        %v2100 = vpack.c.b16 %v1855, %v1848
        %v2101 = vpack.c.b16 %v1856, %v1849
        %v2102 = vpack.c.b16 %v1857, %v1850
        %v2103 = vpack.c.b16 %v1858, %v1851
        %v2104 = vpack.c.b16 %v1859, %v1852
        %v2105 = vpack.c.b16 %v1867, %v1860
        %v2106 = vpack.c.b16 %v1868, %v1861
        %v2107 = vpack.c.b16 %v1869, %v1862
        %v2108 = vpack.c.b16 %v1870, %v1863
        %v2109 = vpack.c.b16 %v1871, %v1864
        %v2110 = vpack.c.b16 %v1872, %v1865
        %v2111 = vpack.c.b16 %v1873, %v1866
        %v2112 = vpack.c.b16 %v1881, %v1874
        %v2113 = vpack.c.b16 %v1882, %v1875
        %v2114 = vpack.c.b16 %v1883, %v1876
        %v2115 = vpack.c.b16 %v1884, %v1877
        %v2116 = vpack.c.b16 %v1885, %v1878
        %v2117 = vpack.c.b16 %v1886, %v1879
        %v2118 = vpack.c.b16 %v1887, %v1880
        %v2119 = vpack.c.b16 %v1895, %v1888
        %v2120 = vpack.c.b16 %v1896, %v1889
        %v2121 = vpack.c.b16 %v1897, %v1890
        %v2122 = vpack.c.b16 %v1898, %v1891
        %v2123 = vpack.c.b16 %v1899, %v1892
        %v2124 = vpack.c.b16 %v1900, %v1893
        %v2125 = vpack.c.b16 %v1901, %v1894
        %2350 = vmatprep.subr.bf16.mxu0 %v1903
        %2351 = vmatpush1.bf16.msra.mxu0 %v1902
        %2352 = vmatprep.subr.bf16.mxu0 %v1910
        %2353 = vmatpush1.bf16.msra.mxu0 %v1909
        %2354 = vmatprep.subr.bf16.mxu0 %v1917
        %2355 = vmatpush1.bf16.msra.mxu0 %v1916
        %2356 = vmatprep.subr.bf16.mxu0 %v1924
        %2357 = vmatpush1.bf16.msra.mxu0 %v1923
        %2358 = vmatprep.subr.bf16.mxu0 %v1931
        %2359 = vmatpush1.bf16.msra.mxu0 %v1930
        %2360 = vmatprep.subr.bf16.mxu0 %v1938
        %2361 = vmatpush1.bf16.msra.mxu0 %v1937
        %2362 = vmatprep.subr.bf16.mxu0 %v1945
        %2363 = vmatpush1.bf16.msra.mxu0 %v1944
        %2364 = vmatprep.subr.bf16.mxu0 %v1952
        %2365 = vmatpush1.bf16.msra.mxu0 %v1951
        %2366 = vmatprep.subr.bf16.mxu0 %v1959
        %2367 = vmatpush1.bf16.msra.mxu0 %v1958
        %2368 = vmatprep.subr.bf16.mxu0 %v1966
        %2369 = vmatpush1.bf16.msra.mxu0 %v1965
        %2370 = vmatprep.subr.bf16.mxu0 %v1973
        %2371 = vmatpush1.bf16.msra.mxu0 %v1972
        %2372 = vmatprep.subr.bf16.mxu0 %v1980
        %2373 = vmatpush1.bf16.msra.mxu0 %v1979
        %2374 = vmatprep.subr.bf16.mxu0 %v1987
        %2375 = vmatpush1.bf16.msra.mxu0 %v1986
        %2376 = vmatprep.subr.bf16.mxu0 %v1994
        %2377 = vmatpush1.bf16.msra.mxu0 %v1993
        %2378 = vmatprep.subr.bf16.mxu0 %v2001
        %2379 = vmatpush1.bf16.msra.mxu0 %v2000
        %2380 = vmatprep.subr.bf16.mxu0 %v2008
        %2381 = vmatpush1.bf16.msra.mxu0 %v2007
        %2382 = vmatprep.mubr.bf16.mxu0 %v902
        %2383 = vmatmul.mubr.bf16.gmra.mrb[0].mxu0 %v901
        %v2384 = vpop.f32.mrb[0].mxu0
        %v2385 = vadd.f32 %v1166, %v2384
        %v2386 = vpop.f32.mrb[0].mxu0
        %v2387 = vadd.f32 %v1170, %v2386
        %v2388 = vpop.f32.mrb[0].mxu0
        %v2389 = vpop.f32.mrb[0].mxu0
        %2390 = vdwg.mxu0
        %2391 = vmatprep.subr.bf16.mxu0 %v2015
        %2392 = vmatpush1.bf16.msra.mxu0 %v2014
        %2393 = vmatprep.subr.bf16.mxu0 %v2022
        %2394 = vmatpush1.bf16.msra.mxu0 %v2021
        %2395 = vmatprep.subr.bf16.mxu0 %v2029
        %2396 = vmatpush1.bf16.msra.mxu0 %v2028
        %2397 = vmatprep.subr.bf16.mxu0 %v2036
        %2398 = vmatpush1.bf16.msra.mxu0 %v2035
        %2399 = vmatprep.subr.bf16.mxu0 %v2043
        %2400 = vmatpush1.bf16.msra.mxu0 %v2042
        %2401 = vmatprep.subr.bf16.mxu0 %v2050
        %2402 = vmatpush1.bf16.msra.mxu0 %v2049
        %2403 = vmatprep.subr.bf16.mxu0 %v2057
        %2404 = vmatpush1.bf16.msra.mxu0 %v2056
        %2405 = vmatprep.subr.bf16.mxu0 %v2064
        %2406 = vmatpush1.bf16.msra.mxu0 %v2063
        %2407 = vmatprep.subr.bf16.mxu0 %v2071
        %2408 = vmatpush1.bf16.msra.mxu0 %v2070
        %2409 = vmatprep.subr.bf16.mxu0 %v2078
        %2410 = vmatpush1.bf16.msra.mxu0 %v2077
        %2411 = vmatprep.subr.bf16.mxu0 %v2085
        %2412 = vmatpush1.bf16.msra.mxu0 %v2084
        %2413 = vmatprep.subr.bf16.mxu0 %v2092
        %2414 = vmatpush1.bf16.msra.mxu0 %v2091
        %2415 = vmatprep.subr.bf16.mxu0 %v2099
        %2416 = vmatpush1.bf16.msra.mxu0 %v2098
        %2417 = vmatprep.subr.bf16.mxu0 %v2106
        %2418 = vmatpush1.bf16.msra.mxu0 %v2105
        %2419 = vmatprep.subr.bf16.mxu0 %v2113
        %2420 = vmatpush1.bf16.msra.mxu0 %v2112
        %2421 = vmatprep.subr.bf16.mxu0 %v2120
        %2422 = vmatpush1.bf16.msra.mxu0 %v2119
        %2423 = vmatprep.mubr.bf16.mxu0 %v904
        %2424 = vmatmul.mubr.bf16.gmra.mrb[0].mxu0 %v903
        %v2425 = vpop.f32.mrb[0].mxu0
        %v2426 = vadd.f32 %v2385, %v2425
        %v2427 = vpop.f32.mrb[0].mxu0
        %v2428 = vadd.f32 %v2387, %v2427
        %v2429 = vpop.f32.mrb[0].mxu0
        %v2430 = vpop.f32.mrb[0].mxu0
        %2431 = vdwg.mxu0
        %2432 = vmatprep.subr.bf16.mxu0 %v1905
        %2433 = vmatpush1.bf16.msra.mxu0 %v1904
        %2434 = vmatprep.subr.bf16.mxu0 %v1912
        %2435 = vmatpush1.bf16.msra.mxu0 %v1911
        %2436 = vmatprep.subr.bf16.mxu0 %v1919
        %2437 = vmatpush1.bf16.msra.mxu0 %v1918
        %2438 = vmatprep.subr.bf16.mxu0 %v1926
        %2439 = vmatpush1.bf16.msra.mxu0 %v1925
        %2440 = vmatprep.subr.bf16.mxu0 %v1933
        %2441 = vmatpush1.bf16.msra.mxu0 %v1932
        %2442 = vmatprep.subr.bf16.mxu0 %v1940
        %2443 = vmatpush1.bf16.msra.mxu0 %v1939
        %2444 = vmatprep.subr.bf16.mxu0 %v1947
        %2445 = vmatpush1.bf16.msra.mxu0 %v1946
        %2446 = vmatprep.subr.bf16.mxu0 %v1954
        %2447 = vmatpush1.bf16.msra.mxu0 %v1953
        %2448 = vmatprep.subr.bf16.mxu0 %v1961
        %2449 = vmatpush1.bf16.msra.mxu0 %v1960
        %2450 = vmatprep.subr.bf16.mxu0 %v1968
        %2451 = vmatpush1.bf16.msra.mxu0 %v1967
        %2452 = vmatprep.subr.bf16.mxu0 %v1975
        %2453 = vmatpush1.bf16.msra.mxu0 %v1974
        %2454 = vmatprep.subr.bf16.mxu0 %v1982
        %2455 = vmatpush1.bf16.msra.mxu0 %v1981
        %2456 = vmatprep.subr.bf16.mxu0 %v1989
        %2457 = vmatpush1.bf16.msra.mxu0 %v1988
        %2458 = vmatprep.subr.bf16.mxu0 %v1996
        %2459 = vmatpush1.bf16.msra.mxu0 %v1995
        %2460 = vmatprep.subr.bf16.mxu0 %v2003
        %2461 = vmatpush1.bf16.msra.mxu0 %v2002
        %2462 = vmatprep.subr.bf16.mxu0 %v2010
        %2463 = vmatpush1.bf16.msra.mxu0 %v2009
        %2464 = vmatprep.mubr.bf16.mxu0 %v902
        %2465 = vmatmul.mubr.bf16.gmra.mrb[0].mxu0 %v901
        %v2466 = vpop.f32.mrb[0].mxu0
        %v2467 = vadd.f32 %v1174, %v2466
        %v2468 = vpop.f32.mrb[0].mxu0
        %v2469 = vadd.f32 %v1178, %v2468
        %v2470 = vpop.f32.mrb[0].mxu0
        %v2471 = vpop.f32.mrb[0].mxu0
        %2472 = vdwg.mxu0
        %2473 = vmatprep.subr.bf16.mxu0 %v2017
        %2474 = vmatpush1.bf16.msra.mxu0 %v2016
        %2475 = vmatprep.subr.bf16.mxu0 %v2024
        %2476 = vmatpush1.bf16.msra.mxu0 %v2023
        %2477 = vmatprep.subr.bf16.mxu0 %v2031
        %2478 = vmatpush1.bf16.msra.mxu0 %v2030
        %2479 = vmatprep.subr.bf16.mxu0 %v2038
        %2480 = vmatpush1.bf16.msra.mxu0 %v2037
        %2481 = vmatprep.subr.bf16.mxu0 %v2045
        %2482 = vmatpush1.bf16.msra.mxu0 %v2044
        %2483 = vmatprep.subr.bf16.mxu0 %v2052
        %2484 = vmatpush1.bf16.msra.mxu0 %v2051
        %2485 = vmatprep.subr.bf16.mxu0 %v2059
        %2486 = vmatpush1.bf16.msra.mxu0 %v2058
        %2487 = vmatprep.subr.bf16.mxu0 %v2066
        %2488 = vmatpush1.bf16.msra.mxu0 %v2065
        %2489 = vmatprep.subr.bf16.mxu0 %v2073
        %2490 = vmatpush1.bf16.msra.mxu0 %v2072
        %2491 = vmatprep.subr.bf16.mxu0 %v2080
        %2492 = vmatpush1.bf16.msra.mxu0 %v2079
        %2493 = vmatprep.subr.bf16.mxu0 %v2087
        %2494 = vmatpush1.bf16.msra.mxu0 %v2086
        %2495 = vmatprep.subr.bf16.mxu0 %v2094
        %2496 = vmatpush1.bf16.msra.mxu0 %v2093
        %2497 = vmatprep.subr.bf16.mxu0 %v2101
        %2498 = vmatpush1.bf16.msra.mxu0 %v2100
        %2499 = vmatprep.subr.bf16.mxu0 %v2108
        %2500 = vmatpush1.bf16.msra.mxu0 %v2107
        %2501 = vmatprep.subr.bf16.mxu0 %v2115
        %2502 = vmatpush1.bf16.msra.mxu0 %v2114
        %2503 = vmatprep.subr.bf16.mxu0 %v2122
        %2504 = vmatpush1.bf16.msra.mxu0 %v2121
        %2505 = vmatprep.mubr.bf16.mxu0 %v904
        %2506 = vmatmul.mubr.bf16.gmra.mrb[0].mxu0 %v903
        %v2507 = vpop.f32.mrb[0].mxu0
        %v2508 = vadd.f32 %v2467, %v2507
        %v2509 = vpop.f32.mrb[0].mxu0
        %v2510 = vadd.f32 %v2469, %v2509
        %v2511 = vpop.f32.mrb[0].mxu0
        %v2512 = vpop.f32.mrb[0].mxu0
        %2513 = vdwg.mxu0
        %2514 = vmatprep.subr.bf16.mxu0 %v1907
        %2515 = vmatpush1.bf16.msra.mxu0 %v1906
        %2516 = vmatprep.subr.bf16.mxu0 %v1914
        %2517 = vmatpush1.bf16.msra.mxu0 %v1913
        %2518 = vmatprep.subr.bf16.mxu0 %v1921
        %2519 = vmatpush1.bf16.msra.mxu0 %v1920
        %2520 = vmatprep.subr.bf16.mxu0 %v1928
        %2521 = vmatpush1.bf16.msra.mxu0 %v1927
        %2522 = vmatprep.subr.bf16.mxu0 %v1935
        %2523 = vmatpush1.bf16.msra.mxu0 %v1934
        %2524 = vmatprep.subr.bf16.mxu0 %v1942
        %2525 = vmatpush1.bf16.msra.mxu0 %v1941
        %2526 = vmatprep.subr.bf16.mxu0 %v1949
        %2527 = vmatpush1.bf16.msra.mxu0 %v1948
        %2528 = vmatprep.subr.bf16.mxu0 %v1956
        %2529 = vmatpush1.bf16.msra.mxu0 %v1955
        %2530 = vmatprep.subr.bf16.mxu0 %v1963
        %2531 = vmatpush1.bf16.msra.mxu0 %v1962
        %2532 = vmatprep.subr.bf16.mxu0 %v1970
        %2533 = vmatpush1.bf16.msra.mxu0 %v1969
        %2534 = vmatprep.subr.bf16.mxu0 %v1977
        %2535 = vmatpush1.bf16.msra.mxu0 %v1976
        %2536 = vmatprep.subr.bf16.mxu0 %v1984
        %2537 = vmatpush1.bf16.msra.mxu0 %v1983
        %2538 = vmatprep.subr.bf16.mxu0 %v1991
        %2539 = vmatpush1.bf16.msra.mxu0 %v1990
        %2540 = vmatprep.subr.bf16.mxu0 %v1998
        %2541 = vmatpush1.bf16.msra.mxu0 %v1997
        %2542 = vmatprep.subr.bf16.mxu0 %v2005
        %2543 = vmatpush1.bf16.msra.mxu0 %v2004
        %2544 = vmatprep.subr.bf16.mxu0 %v2012
        %2545 = vmatpush1.bf16.msra.mxu0 %v2011
        %2546 = vmatprep.mubr.bf16.mxu0 %v902
        %2547 = vmatmul.mubr.bf16.gmra.mrb[0].mxu0 %v901
        %v2548 = vpop.f32.mrb[0].mxu0
        %v2549 = vadd.f32 %v1182, %v2548
        %v2550 = vpop.f32.mrb[0].mxu0
        %v2551 = vadd.f32 %v1186, %v2550
        %v2552 = vpop.f32.mrb[0].mxu0
        %v2553 = vpop.f32.mrb[0].mxu0
        %2554 = vdwg.mxu0
        %2555 = vmatprep.subr.bf16.mxu0 %v2019
        %2556 = vmatpush1.bf16.msra.mxu0 %v2018
        %2557 = vmatprep.subr.bf16.mxu0 %v2026
        %2558 = vmatpush1.bf16.msra.mxu0 %v2025
        %2559 = vmatprep.subr.bf16.mxu0 %v2033
        %2560 = vmatpush1.bf16.msra.mxu0 %v2032
        %2561 = vmatprep.subr.bf16.mxu0 %v2040
        %2562 = vmatpush1.bf16.msra.mxu0 %v2039
        %2563 = vmatprep.subr.bf16.mxu0 %v2047
        %2564 = vmatpush1.bf16.msra.mxu0 %v2046
        %2565 = vmatprep.subr.bf16.mxu0 %v2054
        %2566 = vmatpush1.bf16.msra.mxu0 %v2053
        %2567 = vmatprep.subr.bf16.mxu0 %v2061
        %2568 = vmatpush1.bf16.msra.mxu0 %v2060
        %2569 = vmatprep.subr.bf16.mxu0 %v2068
        %2570 = vmatpush1.bf16.msra.mxu0 %v2067
        %2571 = vmatprep.subr.bf16.mxu0 %v2075
        %2572 = vmatpush1.bf16.msra.mxu0 %v2074
        %2573 = vmatprep.subr.bf16.mxu0 %v2082
        %2574 = vmatpush1.bf16.msra.mxu0 %v2081
        %2575 = vmatprep.subr.bf16.mxu0 %v2089
        %2576 = vmatpush1.bf16.msra.mxu0 %v2088
        %2577 = vmatprep.subr.bf16.mxu0 %v2096
        %2578 = vmatpush1.bf16.msra.mxu0 %v2095
        %2579 = vmatprep.subr.bf16.mxu0 %v2103
        %2580 = vmatpush1.bf16.msra.mxu0 %v2102
        %2581 = vmatprep.subr.bf16.mxu0 %v2110
        %2582 = vmatpush1.bf16.msra.mxu0 %v2109
        %2583 = vmatprep.subr.bf16.mxu0 %v2117
        %2584 = vmatpush1.bf16.msra.mxu0 %v2116
        %2585 = vmatprep.subr.bf16.mxu0 %v2124
        %2586 = vmatpush1.bf16.msra.mxu0 %v2123
        %2587 = vmatprep.mubr.bf16.mxu0 %v904
        %2588 = vmatmul.mubr.bf16.gmra.mrb[0].mxu0 %v903
        %v2589 = vpop.f32.mrb[0].mxu0
        %v2590 = vadd.f32 %v2549, %v2589
        %v2591 = vpop.f32.mrb[0].mxu0
        %v2592 = vadd.f32 %v2551, %v2591
        %v2593 = vpop.f32.mrb[0].mxu0
        %v2594 = vpop.f32.mrb[0].mxu0
        %2595 = vdwg.mxu0
        %2596 = vmatprep.subr.bf16.mxu0 0
        %2597 = vmatpush1.bf16.msra.mxu0 %v1908
        %2598 = vmatprep.subr.bf16.mxu0 0
        %2599 = vmatpush1.bf16.msra.mxu0 %v1915
        %2600 = vmatprep.subr.bf16.mxu0 0
        %2601 = vmatpush1.bf16.msra.mxu0 %v1922
        %2602 = vmatprep.subr.bf16.mxu0 0
        %2603 = vmatpush1.bf16.msra.mxu0 %v1929
        %2604 = vmatprep.subr.bf16.mxu0 0
        %2605 = vmatpush1.bf16.msra.mxu0 %v1936
        %2606 = vmatprep.subr.bf16.mxu0 0
        %2607 = vmatpush1.bf16.msra.mxu0 %v1943
        %2608 = vmatprep.subr.bf16.mxu0 0
        %2609 = vmatpush1.bf16.msra.mxu0 %v1950
        %2610 = vmatprep.subr.bf16.mxu0 0
        %2611 = vmatpush1.bf16.msra.mxu0 %v1957
        %2612 = vmatprep.subr.bf16.mxu0 0
        %2613 = vmatpush1.bf16.msra.mxu0 %v1964
        %2614 = vmatprep.subr.bf16.mxu0 0
        %2615 = vmatpush1.bf16.msra.mxu0 %v1971
        %2616 = vmatprep.subr.bf16.mxu0 0
        %2617 = vmatpush1.bf16.msra.mxu0 %v1978
        %2618 = vmatprep.subr.bf16.mxu0 0
        %2619 = vmatpush1.bf16.msra.mxu0 %v1985
        %2620 = vmatprep.subr.bf16.mxu0 0
        %2621 = vmatpush1.bf16.msra.mxu0 %v1992
        %2622 = vmatprep.subr.bf16.mxu0 0
        %2623 = vmatpush1.bf16.msra.mxu0 %v1999
        %2624 = vmatprep.subr.bf16.mxu0 0
        %2625 = vmatpush1.bf16.msra.mxu0 %v2006
        %2626 = vmatprep.subr.bf16.mxu0 0
        %2627 = vmatpush1.bf16.msra.mxu0 %v2013
        %2628 = vmatprep.mubr.bf16.mxu0 %v902
        %2629 = vmatmul.mubr.bf16.gmra.mrb[0].mxu0 %v901
        %v2630 = vpop.f32.mrb[0].mxu0
        %v2631 = vadd.f32 %v1190, %v2630
        %v2632 = vpop.f32.mrb[0].mxu0
        %v2633 = vpop.f32.mrb[0].mxu0
        %v2634 = vpop.f32.mrb[0].mxu0
        %2635 = vdwg.mxu0
        %2636 = vmatprep.subr.bf16.mxu0 0
        %2637 = vmatpush1.bf16.msra.mxu0 %v2020
        %2638 = vmatprep.subr.bf16.mxu0 0
        %2639 = vmatpush1.bf16.msra.mxu0 %v2027
        %2640 = vmatprep.subr.bf16.mxu0 0
        %2641 = vmatpush1.bf16.msra.mxu0 %v2034
        %2642 = vmatprep.subr.bf16.mxu0 0
        %2643 = vmatpush1.bf16.msra.mxu0 %v2041
        %2644 = vmatprep.subr.bf16.mxu0 0
        %2645 = vmatpush1.bf16.msra.mxu0 %v2048
        %2646 = vmatprep.subr.bf16.mxu0 0
        %2647 = vmatpush1.bf16.msra.mxu0 %v2055
        %2648 = vmatprep.subr.bf16.mxu0 0
        %2649 = vmatpush1.bf16.msra.mxu0 %v2062
        %2650 = vmatprep.subr.bf16.mxu0 0
        %2651 = vmatpush1.bf16.msra.mxu0 %v2069
        %2652 = vmatprep.subr.bf16.mxu0 0
        %2653 = vmatpush1.bf16.msra.mxu0 %v2076
        %2654 = vmatprep.subr.bf16.mxu0 0
        %2655 = vmatpush1.bf16.msra.mxu0 %v2083
        %2656 = vmatprep.subr.bf16.mxu0 0
        %2657 = vmatpush1.bf16.msra.mxu0 %v2090
        %2658 = vmatprep.subr.bf16.mxu0 0
        %2659 = vmatpush1.bf16.msra.mxu0 %v2097
        %2660 = vmatprep.subr.bf16.mxu0 0
        %2661 = vmatpush1.bf16.msra.mxu0 %v2104
        %2662 = vmatprep.subr.bf16.mxu0 0
        %2663 = vmatpush1.bf16.msra.mxu0 %v2111
        %2664 = vmatprep.subr.bf16.mxu0 0
        %2665 = vmatpush1.bf16.msra.mxu0 %v2118
        %2666 = vmatprep.subr.bf16.mxu0 0
        %2667 = vmatpush1.bf16.msra.mxu0 %v2125
        %2668 = vmatprep.mubr.bf16.mxu0 %v904
        %2669 = vmatmul.mubr.bf16.gmra.mrb[0].mxu0 %v903
        %v2670 = vpop.f32.mrb[0].mxu0
        %v2671 = vadd.f32 %v2631, %v2670
        %v2672 = vpop.f32.mrb[0].mxu0
        %v2673 = vpop.f32.mrb[0].mxu0
        %v2674 = vpop.f32.mrb[0].mxu0
        %2675 = vdwg.mxu0
        %v2676 = vld [vmem:[%s320] sm:$0xff]
        %v2677 = vld [vmem:[%s320 + $0x8] sm:$0xff]
        %v2678 = vld [vmem:[%s320 + $0x10] sm:$0xff]
        %v2679 = vld [vmem:[%s320 + $0x18] sm:$0xff]
        %v2680 = vld [vmem:[%s320 + $0x20] sm:$0xff]
        %v2681 = vld [vmem:[%s320 + $0x28] sm:$0xff]
        %v2682 = vld [vmem:[%s320 + $0x30] sm:$0xff]
        %v2683 = vand.u32 2147483647, %v2426
        %v2684 = vand.u32 2147483647, %v2428
        %v2685 = vand.u32 2147483647, %v2508
        %v2686 = vand.u32 2147483647, %v2510
        %v2687 = vand.u32 2147483647, %v2590
        %v2688 = vand.u32 2147483647, %v2592
        %v2689 = vand.u32 2147483647, %v2671
        %v2690 = vsub.f32 0.0, %v2683
        %v2691 = vsub.f32 0.0, %v2684
        %v2692 = vsub.f32 0.0, %v2685
        %v2693 = vsub.f32 0.0, %v2686
        %v2694 = vsub.f32 0.0, %v2687
        %v2695 = vsub.f32 0.0, %v2688
        %v2696 = vsub.f32 0.0, %v2689
        %v2697 = vmul.f32 %v2690, 1.442695
        %v2698 = vpow.pop %v2697
        %v2699 = vmul.f32 %v2691, 1.442695
        %v2700 = vpow.pop %v2699
        %v2701 = vmul.f32 %v2692, 1.442695
        %v2702 = vpow.pop %v2701
        %v2703 = vmul.f32 %v2693, 1.442695
        %v2704 = vpow.pop %v2703
        %v2705 = vmul.f32 %v2694, 1.442695
        %v2706 = vpow.pop %v2705
        %v2707 = vmul.f32 %v2695, 1.442695
        %v2708 = vpow.pop %v2707
        %v2709 = vmul.f32 %v2696, 1.442695
        %v2710 = vpow.pop %v2709
        %v2711 = vadd.f32 %v2698, 1.0
        %v2712 = vlog2.pop %v2711
        %v2713 = vmul.f32 %v2712, 0.6931472
        %v2714 = vmul.f32 -0.5, %v2698
        %v2715 = vadd.f32 %v2714, 1.0
        %v2716 = vmul.f32 %v2715, %v2698
        %v2717 = vand.u32 2147483647, %v2698
        %vm2718 = vcmp.lt.f32.partialorder %v2717, 0.0004427343
        %v2719 = vsel %vm2718, %v2716, %v2713
        %v2720 = vadd.f32 %v2700, 1.0
        %v2721 = vlog2.pop %v2720
        %v2722 = vmul.f32 %v2721, 0.6931472
        %v2723 = vmul.f32 -0.5, %v2700
        %v2724 = vadd.f32 %v2723, 1.0
        %v2725 = vmul.f32 %v2724, %v2700
        %v2726 = vand.u32 2147483647, %v2700
        %vm2727 = vcmp.lt.f32.partialorder %v2726, 0.0004427343
        %v2728 = vsel %vm2727, %v2725, %v2722
        %v2729 = vadd.f32 %v2702, 1.0
        %v2730 = vlog2.pop %v2729
        %v2731 = vmul.f32 %v2730, 0.6931472
        %v2732 = vmul.f32 -0.5, %v2702
        %v2733 = vadd.f32 %v2732, 1.0
        %v2734 = vmul.f32 %v2733, %v2702
        %v2735 = vand.u32 2147483647, %v2702
        %vm2736 = vcmp.lt.f32.partialorder %v2735, 0.0004427343
        %v2737 = vsel %vm2736, %v2734, %v2731
        %v2738 = vadd.f32 %v2704, 1.0
        %v2739 = vlog2.pop %v2738
        %v2740 = vmul.f32 %v2739, 0.6931472
        %v2741 = vmul.f32 -0.5, %v2704
        %v2742 = vadd.f32 %v2741, 1.0
        %v2743 = vmul.f32 %v2742, %v2704
        %v2744 = vand.u32 2147483647, %v2704
        %vm2745 = vcmp.lt.f32.partialorder %v2744, 0.0004427343
        %v2746 = vsel %vm2745, %v2743, %v2740
        %v2747 = vadd.f32 %v2706, 1.0
        %v2748 = vlog2.pop %v2747
        %v2749 = vmul.f32 %v2748, 0.6931472
        %v2750 = vmul.f32 -0.5, %v2706
        %v2751 = vadd.f32 %v2750, 1.0
        %v2752 = vmul.f32 %v2751, %v2706
        %v2753 = vand.u32 2147483647, %v2706
        %vm2754 = vcmp.lt.f32.partialorder %v2753, 0.0004427343
        %v2755 = vsel %vm2754, %v2752, %v2749
        %v2756 = vadd.f32 %v2708, 1.0
        %v2757 = vlog2.pop %v2756
        %v2758 = vmul.f32 %v2757, 0.6931472
        %v2759 = vmul.f32 -0.5, %v2708
        %v2760 = vadd.f32 %v2759, 1.0
        %v2761 = vmul.f32 %v2760, %v2708
        %v2762 = vand.u32 2147483647, %v2708
        %vm2763 = vcmp.lt.f32.partialorder %v2762, 0.0004427343
        %v2764 = vsel %vm2763, %v2761, %v2758
        %v2765 = vadd.f32 %v2710, 1.0
        %v2766 = vlog2.pop %v2765
        %v2767 = vmul.f32 %v2766, 0.6931472
        %v2768 = vmul.f32 -0.5, %v2710
        %v2769 = vadd.f32 %v2768, 1.0
        %v2770 = vmul.f32 %v2769, %v2710
        %v2771 = vand.u32 2147483647, %v2710
        %vm2772 = vcmp.lt.f32.partialorder %v2771, 0.0004427343
        %v2773 = vsel %vm2772, %v2770, %v2767
        %v2774 = vmax.f32 %v2426, 0.0
        %v2775 = vmax.f32 %v2428, 0.0
        %v2776 = vmax.f32 %v2508, 0.0
        %v2777 = vmax.f32 %v2510, 0.0
        %v2778 = vmax.f32 %v2590, 0.0
        %v2779 = vmax.f32 %v2592, 0.0
        %v2780 = vmax.f32 %v2671, 0.0
        %v2781 = vadd.f32 %v2774, %v2719
        %v2782 = vadd.f32 %v2775, %v2728
        %v2783 = vadd.f32 %v2776, %v2737
        %v2784 = vadd.f32 %v2777, %v2746
        %v2785 = vadd.f32 %v2778, %v2755
        %v2786 = vadd.f32 %v2779, %v2764
        %v2787 = vadd.f32 %v2780, %v2773
        %v2788 = vmin.f32 %v2781, 100.0
        %v2789 = vmin.f32 %v2782, 100.0
        %v2790 = vmin.f32 %v2783, 100.0
        %v2791 = vmin.f32 %v2784, 100.0
        %v2792 = vmin.f32 %v2785, 100.0
        %v2793 = vmin.f32 %v2786, 100.0
        %v2794 = vmin.f32 %v2787, 100.0
        %v2795 = vsub.f32 0.0, %v2426
        %v2796 = vsub.f32 0.0, %v2428
        %v2797 = vsub.f32 0.0, %v2508
        %v2798 = vsub.f32 0.0, %v2510
        %v2799 = vsub.f32 0.0, %v2590
        %v2800 = vsub.f32 0.0, %v2592
        %v2801 = vsub.f32 0.0, %v2671
        %v2802 = vmax.f32 %v2795, 0.0
        %v2803 = vmax.f32 %v2796, 0.0
        %v2804 = vmax.f32 %v2797, 0.0
        %v2805 = vmax.f32 %v2798, 0.0
        %v2806 = vmax.f32 %v2799, 0.0
        %v2807 = vmax.f32 %v2800, 0.0
        %v2808 = vmax.f32 %v2801, 0.0
        %v2809 = vadd.f32 %v2802, %v2719
        %v2810 = vadd.f32 %v2803, %v2728
        %v2811 = vadd.f32 %v2804, %v2737
        %v2812 = vadd.f32 %v2805, %v2746
        %v2813 = vadd.f32 %v2806, %v2755
        %v2814 = vadd.f32 %v2807, %v2764
        %v2815 = vadd.f32 %v2808, %v2773
        %v2816 = vmin.f32 %v2809, 100.0
        %v2817 = vmin.f32 %v2810, 100.0
        %v2818 = vmin.f32 %v2811, 100.0
        %v2819 = vmin.f32 %v2812, 100.0
        %v2820 = vmin.f32 %v2813, 100.0
        %v2821 = vmin.f32 %v2814, 100.0
        %v2822 = vmin.f32 %v2815, 100.0
        %v2823 = vmul.f32 %v2676, %v2816
        %v2824 = vmul.f32 %v2677, %v2817
        %v2825 = vmul.f32 %v2678, %v2818
        %v2826 = vmul.f32 %v2679, %v2819
        %v2827 = vmul.f32 %v2680, %v2820
        %v2828 = vmul.f32 %v2681, %v2821
        %v2829 = vmul.f32 %v2682, %v2822
        %v2830 = vsub.f32 1.0, %v2676
        %v2831 = vsub.f32 1.0, %v2677
        %v2832 = vsub.f32 1.0, %v2678
        %v2833 = vsub.f32 1.0, %v2679
        %v2834 = vsub.f32 1.0, %v2680
        %v2835 = vsub.f32 1.0, %v2681
        %v2836 = vsub.f32 1.0, %v2682
        %v2837 = vmul.f32 %v2830, %v2788
        %v2838 = vmul.f32 %v2831, %v2789
        %v2839 = vmul.f32 %v2832, %v2790
        %v2840 = vmul.f32 %v2833, %v2791
        %v2841 = vmul.f32 %v2834, %v2792
        %v2842 = vmul.f32 %v2835, %v2793
        %v2843 = vmul.f32 %v2836, %v2794
        %v2844 = vadd.f32 %v2823, %v2837
        %v2845 = vadd.f32 %v2824, %v2838
        %v2846 = vadd.f32 %v2825, %v2839
        %v2847 = vadd.f32 %v2826, %v2840
        %v2848 = vadd.f32 %v2827, %v2841
        %v2849 = vadd.f32 %v2828, %v2842
        %v2850 = vadd.f32 %v2829, %v2843
        %2851 = vst [vmem:[%s311] sm:$0xff] %v2844
        %2852 = vst [vmem:[%s311 + $0x8] sm:$0xff] %v2845
        %2853 = vst [vmem:[%s311 + $0x10] sm:$0xff] %v2846
        %2854 = vst [vmem:[%s311 + $0x18] sm:$0xff] %v2847
        %2855 = vst [vmem:[%s311 + $0x20] sm:$0xff] %v2848
        %2856 = vst [vmem:[%s311 + $0x28] sm:$0xff] %v2849
        %vm2857 = vcmask 130048
        %2858 = vst.msk [vmem:[%s311 + $0x30] sm:$0xff] %vm2857, %v2850
        %s2859 = sand.u32 %s208, 1
        %s2860 = scalar_lea.sflag [#allocation3], %s2859
        %s2861 = sand.u32 %s208, 1
        %s2862 = smul.addr %s2861, 56
        %s2863 = scalar_lea.vmem [#allocation2], %s2862
        // Predicated region
        $region53: #{decoder_forward.1} parent=51 // pred_check
          %p2864 = pneg %p218
        $region54: #{decoder_forward.1} parent=51 // pred_check_branch
          %2866 = sbr.rel (%p2864) target = $region56
        $region55: #{decoder_forward.1} parent=51 // pred_region
          %s2868 = ssub.s32 896, 896
          %2869 = vsyncadd %s2860, %s2868
          %s2870 = smul.addr %s22, 7
          %s2871 = smul.addr %s2870, 128
          %s2872 = scalar_lea.hbm %s8, %s2871
          %s2874 = sshll.u32 %s2863, 4
          %s2875 = int_to_ptr.vmem [resolvable:$true] %s2874
          %2877 = dma.vmem_to_hbm [thread:$0]  %s2875, 896, %s2872, %s2860
        $region56: #{decoder_forward.1} parent=51 // pred_fallthru
          _
      $region52: #{decoder_forward.1} parent=5 // pred_fallthru
        _
      %p2878 = scmp.le.s32.totalorder 2, %s17
      // Predicated region
      $region57: #{decoder_forward.1} parent=5 // pred_check
        %p2879 = pneg %p2878
      $region58: #{decoder_forward.1} parent=5 // pred_check_branch
        %2881 = sbr.rel (%p2879) target = $region60
      $region59: #{decoder_forward.1} parent=5 // pred_region
        %s2882 = ssub.s32 %s17, 2
        // Predicated region
        $region61: #{decoder_forward.1} parent=59 // pred_check
          %p2883 = pneg %p224
        $region62: #{decoder_forward.1} parent=59 // pred_check_branch
          %2885 = sbr.rel (%p2883) target = $region64
        $region63: #{decoder_forward.1} parent=59 // pred_region
          %s2886 = sand.u32 %s209, 1
          %s2887 = scalar_lea.sflag [#allocation3], %s2886
          %s2888 = sand.u32 %s209, 1
          %s2889 = smul.addr %s2888, 56
          %s2890 = scalar_lea.vmem [#allocation2], %s2889
          %2891 = dma.done %s2887, 896
        $region64: #{decoder_forward.1} parent=59 // pred_fallthru
          _
      $region60: #{decoder_forward.1} parent=5 // pred_fallthru
        _
    $region6: #{decoder_forward.1} parent=1 // loop_footer
      %s21 = sadd.s32 1, %s17
    $region7: #{decoder_forward.1} parent=1 // loop_footer_branch
      %16 = sbr.rel target = $region3
    $region8: #{decoder_forward.1} parent=1 // loop_exit
      _
    %2892 = vsyncpa [#allocation3], 1
    %s2893 = scalar_lea.sflag [#allocation3], 1
    %2894 = vsyncpa %s2893, 1

</llo_original>
